<compile_context>
chip_gen: v6e
topology: v6e:2x2x1
jax: 0.10.0
libtpu: 0.0.40
codegen_flags: <defaults>
</compile_context>

<pallas_src>
import functools

import jax
import jax.numpy as jnp
from jax.experimental import pallas as pl
from jax.experimental.pallas import tpu as pltpu

FEATURE_SIZE = 1280   # efficientnet_b0 classifier[1].in_features
STEM_CH = 32          # efficientnet_b0 stem width
HIDDEN = 256          # domain classifier hidden width
OUT_PAD = 128         # lane-dense padding for the 2-class heads
MAX_TILE_P = 512      # row tile budget (g tile: 512*1280*4B ~ 2.6 MB f32)

# norse LIFParameters() defaults (snn.LIFCell)
TAU_SYN_INV = 200.0
TAU_MEM_INV = 100.0
V_LEAK = 0.0
V_TH = 1.0
V_RESET = 0.0
DT = 1e-3


def _activation_dtype():
    """bf16 elementwise math only where the VPU/EUP support it (v6e / v7x)."""
    try:
        kind = jax.devices()[0].device_kind.lower()
    except Exception:
        return jnp.float32
    return jnp.bfloat16 if ('v6' in kind or 'v7' in kind) else jnp.float32


def _silu(x):
    # Single-EUP-op SiLU: sigmoid(x) == 0.5 * (1 + tanh(x / 2)).  Avoids the
    # exp + reciprocal pair (2 EUP pushes per element) on the dominant op.
    return x * (0.5 * (jnp.tanh(x * 0.5) + 1.0))


# ----------------------------- Pallas kernels -----------------------------

def _accumulate_features(p_idx, cdt, total_rows, needs_mask,
                         stem_ref, bs_ref, wh_ref, bh_ref, acc_ref):
    """Stem bias + SiLU, 1x1 head projection to 1280 + SiLU, masked row
    accumulation into an (8, FEATURE_SIZE) f32 accumulator (VPU adds only;
    the cross-sublane reduce is deferred to the epilogue)."""
    @pl.when(p_idx == 0)
    def _():
        acc_ref[...] = jnp.zeros_like(acc_ref)

    h = _silu(stem_ref[...].astype(cdt) + bs_ref[...].astype(cdt))  # [T,32]
    g = jnp.dot(h.astype(wh_ref.dtype), wh_ref[...],
                preferred_element_type=cdt)                          # [T,1280]
    g = _silu(g + bh_ref[...].astype(cdt))

    tile_p = g.shape[0]
    if needs_mask:
        # Padded rows are nonzero after SiLU(bias)->head->SiLU; zero them
        # before accumulating so the spatial mean is exact.
        rows = jax.lax.broadcasted_iota(jnp.int32, (tile_p, 1), 0)
        n_valid = total_rows - p_idx * tile_p
        g = jnp.where(rows < n_valid, g, jnp.zeros_like(g))

    # Reshape only splits the sublane axis, so the axis-0 sum lowers to plain
    # sublane-aligned VPU adds (no per-tile XLU, no masked 1-sublane RMW).
    acc_ref[...] += jnp.sum(
        g.astype(jnp.float32).reshape(tile_p // 8, 8, FEATURE_SIZE), axis=0)


def _label_kernel(inv_p, cdt, total_rows, needs_mask,
                  stem_ref, bs_ref, wh_ref, bh_ref, wl_ref, bl_ref,
                  out_ref, acc_ref):
    """Feature accumulation + (LIFCell single step, fresh state) + label head."""
    p_idx = pl.program_id(1)
    _accumulate_features(p_idx, cdt, total_rows, needs_mask,
                         stem_ref, bs_ref, wh_ref, bh_ref, acc_ref)

    @pl.when(p_idx == pl.num_programs(1) - 1)
    def _():
        feats = jnp.sum(acc_ref[...], axis=0, keepdims=True) * inv_p  # mean
        # norse LIFCell step with fresh state (v = v_leak = 0, i = 0): spikes
        # are computed from the decayed state *before* the input current is
        # injected, so z == 0 here (semantics of the reference module).
        v = jnp.zeros_like(feats)
        i_syn = jnp.zeros_like(feats)
        v_dec = v + DT * TAU_MEM_INV * ((V_LEAK - v) + i_syn)
        z = (v_dec - V_TH > 0.0).astype(jnp.float32)
        # TODO(synk): for large B, run the head as one batched [B,1280] matmul
        # instead of this per-batch M=1 epilogue (better MXU sublane fill).
        logits = jnp.dot(z.astype(wl_ref.dtype), wl_ref[...],
                         preferred_element_type=jnp.float32) + bl_ref[...]
        out_ref[...] = logits.reshape(out_ref.shape)


def _domain_kernel(inv_p, cdt, total_rows, needs_mask,
                   stem_ref, bs_ref, wh_ref, bh_ref,
                   w1_ref, b1_ref, w2_ref, b2_ref, out_ref, acc_ref):
    """Feature accumulation + domain classifier (grad_reverse = identity fwd)."""
    p_idx = pl.program_id(1)
    _accumulate_features(p_idx, cdt, total_rows, needs_mask,
                         stem_ref, bs_ref, wh_ref, bh_ref, acc_ref)

    @pl.when(p_idx == pl.num_programs(1) - 1)
    def _():
        feats = jnp.sum(acc_ref[...], axis=0, keepdims=True) * inv_p  # mean
        hdom = jnp.dot(feats.astype(w1_ref.dtype), w1_ref[...],
                       preferred_element_type=jnp.float32) + b1_ref[...]
        hdom = jnp.maximum(hdom, 0.0)
        logits = jnp.dot(hdom.astype(w2_ref.dtype), w2_ref[...],
                         preferred_element_type=jnp.float32) + b2_ref[...]
        out_ref[...] = logits.reshape(out_ref.shape)


# ------------------------------ JAX wrappers -------------------------------

def _pick_tile(p, max_tile=MAX_TILE_P):
    """Row-tile size: multiple of 16 (bf16 sublane pack), as large as allowed.
    Prefers an exact divisor of p; otherwise the wrapper pads & the kernel
    masks (the tile never exceeds max_tile, so VMEM use is bounded)."""
    if p <= max_tile:
        return max(16, -(-p // 16) * 16)
    for t in range(max_tile - max_tile % 16, max_tile // 2 - 1, -16):
        if p % t == 0:
            return t
    return max_tile


def init_params(key):
    ks = jax.random.split(key, 10)

    def uni(k, shape, fan_in):
        s = 1.0 / jnp.sqrt(jnp.float32(fan_in))
        return jax.random.uniform(k, shape, jnp.float32, -s, s)

    def pad_cols(w, n=OUT_PAD):
        return jnp.zeros((w.shape[0], n), w.dtype).at[:, :w.shape[1]].set(w)

    fan_stem = 3 * 3 * 3
    return dict(
        w_stem=uni(ks[0], (3, 3, 3, STEM_CH), fan_stem).astype(jnp.bfloat16),
        b_stem=uni(ks[1], (1, STEM_CH), fan_stem),
        w_head=uni(ks[2], (STEM_CH, FEATURE_SIZE), STEM_CH).astype(jnp.bfloat16),
        b_head=uni(ks[3], (1, FEATURE_SIZE), STEM_CH),
        w_label=pad_cols(uni(ks[4], (FEATURE_SIZE, 2),
                             FEATURE_SIZE)).astype(jnp.bfloat16),
        b_label=pad_cols(uni(ks[5], (1, 2), FEATURE_SIZE)),
        w_dom1=uni(ks[6], (FEATURE_SIZE, HIDDEN),
                   FEATURE_SIZE).astype(jnp.bfloat16),
        b_dom1=uni(ks[7], (1, HIDDEN), FEATURE_SIZE),
        w_dom2=pad_cols(uni(ks[8], (HIDDEN, 2), HIDDEN)).astype(jnp.bfloat16),
        b_dom2=pad_cols(uni(ks[9], (1, 2), HIDDEN)),
    )


@functools.partial(jax.jit, static_argnames=('domain',))
def forward(x, params, alpha=1.0, domain=False):
    del alpha  # grad_reverse only affects the backward pass

    # 3x3 stride-2 pad-1 stem conv left to XLA (K=27 badly underfills the MXU
    # inside Pallas).  Emit NHWC bf16 directly so the [B,P,32] row view below
    # is a free reshape (no NCHW->NHWC transpose / f32->bf16 cast round-trip).
    stem = jax.lax.conv_general_dilated(
        x.astype(jnp.bfloat16), params['w_stem'],
        window_strides=(2, 2), padding=((1, 1), (1, 1)),
        dimension_numbers=('NCHW', 'HWIO', 'NHWC'))          # [B,H',W',32] bf16
    b, hp, wp, c = stem.shape
    p = hp * wp
    stem_rows = stem.reshape(b, p, c)

    tile_p = _pick_tile(p)
    num_tiles = -(-p // tile_p)
    padded_p = num_tiles * tile_p
    needs_mask = padded_p != p
    if needs_mask:
        stem_rows = jnp.pad(stem_rows, ((0, 0), (0, padded_p - p), (0, 0)))

    cdt = _activation_dtype()
    inv_p = 1.0 / float(p)
    grid = (b, num_tiles)

    common_specs = [
        pl.BlockSpec((pl.Squeezed(), tile_p, STEM_CH), lambda i, j: (i, j, 0)),
        pl.BlockSpec((1, STEM_CH), lambda i, j: (0, 0)),
        pl.BlockSpec((STEM_CH, FEATURE_SIZE), lambda i, j: (0, 0)),
        pl.BlockSpec((1, FEATURE_SIZE), lambda i, j: (0, 0)),
    ]
    out_spec = pl.BlockSpec((1, 1, OUT_PAD), lambda i, j: (i, 0, 0))
    out_shape = jax.ShapeDtypeStruct((b, 1, OUT_PAD), jnp.float32)
    scratch = [pltpu.VMEM((8, FEATURE_SIZE), jnp.float32)]
    # TODO(synk): on v7x, split the row-tile axis into an outer size-2
    # "parallel" axis with per-core partial accumulators so B=1 inference
    # uses both TensorCores.
    cparams = pltpu.CompilerParams(
        dimension_semantics=("parallel", "arbitrary"),
        vmem_limit_bytes=16 * 1024 * 1024)

    if domain:
        kern = functools.partial(_domain_kernel, inv_p, cdt, p, needs_mask)
        in_specs = common_specs + [
            pl.BlockSpec((FEATURE_SIZE, HIDDEN), lambda i, j: (0, 0)),
            pl.BlockSpec((1, HIDDEN), lambda i, j: (0, 0)),
            pl.BlockSpec((HIDDEN, OUT_PAD), lambda i, j: (0, 0)),
            pl.BlockSpec((1, OUT_PAD), lambda i, j: (0, 0)),
        ]
        args = (stem_rows, params['b_stem'], params['w_head'], params['b_head'],
                params['w_dom1'], params['b_dom1'],
                params['w_dom2'], params['b_dom2'])
    else:
        kern = functools.partial(_label_kernel, inv_p, cdt, p, needs_mask)
        in_specs = common_specs + [
            pl.BlockSpec((FEATURE_SIZE, OUT_PAD), lambda i, j: (0, 0)),
            pl.BlockSpec((1, OUT_PAD), lambda i, j: (0, 0)),
        ]
        args = (stem_rows, params['b_stem'], params['w_head'], params['b_head'],
                params['w_label'], params['b_label'])

    out = pl.pallas_call(
        kern,
        out_shape=out_shape,
        grid=grid,
        in_specs=in_specs,
        out_specs=out_spec,
        scratch_shapes=scratch,
        compiler_params=cparams,
    )(*args)

    return out.reshape(b, OUT_PAD)[:, :2]   # drop lane-padding of the 2-class head


if __name__ == "__main__":
    key = jax.random.PRNGKey(0)
    x = jax.random.normal(key, (2, 3, 16, 16), jnp.float32)   # NCHW
    params = init_params(jax.random.PRNGKey(42))

    label_logits = forward(x, params)                   # label path
    domain_logits = forward(x, params, domain=True)     # domain path
    jax.block_until_ready((label_logits, domain_logits))

    assert label_logits.shape == (2, 2)
    assert domain_logits.shape == (2, 2)
    assert bool(jnp.all(jnp.isfinite(domain_logits)))
    # With a fresh LIF state the membrane never crosses v_th in one step,
    # so spikes are all zero and label logits equal the classifier bias.
    assert jnp.allclose(label_logits,
                        jnp.broadcast_to(params['b_label'][:, :2], (2, 2)),
                        atol=1e-6)

    print("KERNEL_OK")
</pallas_src>

<mosaic_0001>
module attributes {stable_mosaic.version = 11 : i64} {
  func.func @_label_kernel(%arg0: i32, %arg1: i32, %arg2: memref<1x64x32xbf16, #tpu.memory_space<vmem>>, %arg3: memref<1x32xf32, #tpu.memory_space<vmem>>, %arg4: memref<32x1280xbf16, #tpu.memory_space<vmem>>, %arg5: memref<1x1280xf32, #tpu.memory_space<vmem>>, %arg6: memref<1280x128xbf16, #tpu.memory_space<vmem>>, %arg7: memref<1x128xf32, #tpu.memory_space<vmem>>, %arg8: memref<1x1x128xf32, #tpu.memory_space<vmem>>, %arg9: memref<8x1280xf32, #tpu.memory_space<vmem>>) attributes {dimension_semantics = [#tpu.dimension_semantics<parallel>, #tpu.dimension_semantics<arbitrary>], iteration_bounds = array<i64: 2, 1>, scalar_prefetch = 0 : i64, scratch_operands = 1 : i64, tpu.core_type = #tpu.core_type<tc>, window_params = [{transform_indices = @transform_0, window_bounds = array<i64: 1, 64, 32>}, {pipeline_mode = #tpu.pipeline_mode<synchronous>, transform_indices = @transform_1, window_bounds = array<i64: 1, 32>}, {pipeline_mode = #tpu.pipeline_mode<synchronous>, transform_indices = @transform_2, window_bounds = array<i64: 32, 1280>}, {pipeline_mode = #tpu.pipeline_mode<synchronous>, transform_indices = @transform_3, window_bounds = array<i64: 1, 1280>}, {pipeline_mode = #tpu.pipeline_mode<synchronous>, transform_indices = @transform_4, window_bounds = array<i64: 1280, 128>}, {pipeline_mode = #tpu.pipeline_mode<synchronous>, transform_indices = @transform_5, window_bounds = array<i64: 1, 128>}, {transform_indices = @transform_6, window_bounds = array<i64: 1, 1, 128>}]} {
    %c0_i32 = arith.constant 0 : i32
    %0 = arith.cmpi eq, %arg1, %c0_i32 : i32
    %1 = arith.extui %0 : i1 to i32
    %c0_i32_0 = arith.constant 0 : i32
    %2 = arith.cmpi ne, %1, %c0_i32_0 : i32
    scf.if %2 {
      %cst_22 = arith.constant 0.000000e+00 : f32
      %39 = vector.broadcast %cst_22 : f32 to vector<8x1280xf32>
      %c0_23 = arith.constant 0 : index
      %c0_24 = arith.constant 0 : index
      %40 = vector.load %arg9[%c0_23, %c0_24] : memref<8x1280xf32, #tpu.memory_space<vmem>>, vector<8x1280xf32>
      tpu.vector_store %arg9[%c0_23, %c0_24], %39 {strides = array<i32>} : memref<8x1280xf32, #tpu.memory_space<vmem>>, vector<8x1280xf32>,
    } else {
    }
    %c0 = arith.constant 0 : index
    %c0_1 = arith.constant 0 : index
    %c0_2 = arith.constant 0 : index
    %3 = vector.load %arg2[%c0, %c0_1, %c0_2] : memref<1x64x32xbf16, #tpu.memory_space<vmem>>, vector<1x64x32xbf16>
    %4 = vector.shape_cast %3 : vector<1x64x32xbf16> to vector<64x32xbf16>
    %5 = arith.extf %4 : vector<64x32xbf16> to vector<64x32xf32>
    %c0_3 = arith.constant 0 : index
    %c0_4 = arith.constant 0 : index
    %6 = vector.load %arg3[%c0_3, %c0_4] : memref<1x32xf32, #tpu.memory_space<vmem>>, vector<1x32xf32>
    %7 = vector.broadcast %6 : vector<1x32xf32> to vector<64x32xf32>
    %8 = arith.addf %5, %7 : vector<64x32xf32>
    %cst = arith.constant 5.000000e-01 : f32
    %9 = vector.broadcast %cst : f32 to vector<64x32xf32>
    %10 = arith.mulf %8, %9 : vector<64x32xf32>
    %11 = math.tanh %10 : vector<64x32xf32>
    %cst_5 = arith.constant 1.000000e+00 : f32
    %12 = vector.broadcast %cst_5 : f32 to vector<64x32xf32>
    %13 = arith.addf %11, %12 : vector<64x32xf32>
    %cst_6 = arith.constant 5.000000e-01 : f32
    %14 = vector.broadcast %cst_6 : f32 to vector<64x32xf32>
    %15 = arith.mulf %14, %13 : vector<64x32xf32>
    %16 = arith.mulf %8, %15 : vector<64x32xf32>
    %17 = arith.truncf %16 : vector<64x32xf32> to vector<64x32xbf16>
    %c0_7 = arith.constant 0 : index
    %c0_8 = arith.constant 0 : index
    %18 = vector.load %arg4[%c0_7, %c0_8] : memref<32x1280xbf16, #tpu.memory_space<vmem>>, vector<32x1280xbf16>
    %cst_9 = arith.constant dense<0.000000e+00> : vector<64x1280xf32>
    %19 = tpu.matmul %17, %18, %cst_9 {dimension_numbers = #tpu.dot_dimension_numbers<[1], [0], [0], [1], [0, 0, 1, 1], [], []>} : vector<64x32xbf16>, vector<32x1280xbf16>, vector<64x1280xf32> -> vector<64x1280xf32>
    %c0_10 = arith.constant 0 : index
    %c0_11 = arith.constant 0 : index
    %20 = vector.load %arg5[%c0_10, %c0_11] : memref<1x1280xf32, #tpu.memory_space<vmem>>, vector<1x1280xf32>
    %21 = vector.broadcast %20 : vector<1x1280xf32> to vector<64x1280xf32>
    %22 = arith.addf %19, %21 : vector<64x1280xf32>
    %cst_12 = arith.constant 5.000000e-01 : f32
    %23 = vector.broadcast %cst_12 : f32 to vector<64x1280xf32>
    %24 = arith.mulf %22, %23 : vector<64x1280xf32>
    %25 = math.tanh %24 : vector<64x1280xf32>
    %cst_13 = arith.constant 1.000000e+00 : f32
    %26 = vector.broadcast %cst_13 : f32 to vector<64x1280xf32>
    %27 = arith.addf %25, %26 : vector<64x1280xf32>
    %cst_14 = arith.constant 5.000000e-01 : f32
    %28 = vector.broadcast %cst_14 : f32 to vector<64x1280xf32>
    %29 = arith.mulf %28, %27 : vector<64x1280xf32>
    %30 = arith.mulf %22, %29 : vector<64x1280xf32>
    %c0_15 = arith.constant 0 : index
    %c0_16 = arith.constant 0 : index
    %31 = vector.load %arg9[%c0_15, %c0_16] : memref<8x1280xf32, #tpu.memory_space<vmem>>, vector<8x1280xf32>
    %32 = vector.shape_cast %30 : vector<64x1280xf32> to vector<8x8x1280xf32>
    %cst_17 = arith.constant dense<0.000000e+00> : vector<8x1280xf32>
    %33 = vector.multi_reduction <add>, %32, %cst_17 [0] : vector<8x8x1280xf32> to vector<8x1280xf32>
    %34 = arith.addf %31, %33 : vector<8x1280xf32>
    %c0_18 = arith.constant 0 : index
    %c0_19 = arith.constant 0 : index
    %35 = vector.load %arg9[%c0_18, %c0_19] : memref<8x1280xf32, #tpu.memory_space<vmem>>, vector<8x1280xf32>
    tpu.vector_store %arg9[%c0_18, %c0_19], %34 {strides = array<i32>} : memref<8x1280xf32, #tpu.memory_space<vmem>>, vector<8x1280xf32>,
    %c0_i32_20 = arith.constant 0 : i32
    %36 = arith.cmpi eq, %arg1, %c0_i32_20 : i32
    %37 = arith.extui %36 : i1 to i32
    %c0_i32_21 = arith.constant 0 : i32
    %38 = arith.cmpi ne, %37, %c0_i32_21 : i32
    scf.if %38 {
      %cst_22 = arith.constant 0.000000e+00 : f32
      %39 = vector.broadcast %cst_22 : f32 to vector<1x1280xf32>
      %cst_23 = arith.constant 0.000000e+00 : f32
      %40 = vector.broadcast %cst_23 : f32 to vector<1x1280xf32>
      %cst_24 = arith.constant 0.000000e+00 : f32
      %41 = vector.broadcast %cst_24 : f32 to vector<1x1280xf32>
      %42 = arith.subf %41, %39 : vector<1x1280xf32>
      %43 = arith.addf %42, %40 : vector<1x1280xf32>
      %cst_25 = arith.constant 1.000000e-01 : f32
      %44 = vector.broadcast %cst_25 : f32 to vector<1x1280xf32>
      %45 = arith.mulf %44, %43 : vector<1x1280xf32>
      %46 = arith.addf %39, %45 : vector<1x1280xf32>
      %cst_26 = arith.constant 1.000000e+00 : f32
      %47 = vector.broadcast %cst_26 : f32 to vector<1x1280xf32>
      %48 = arith.subf %46, %47 : vector<1x1280xf32>
      %cst_27 = arith.constant 0.000000e+00 : f32
      %49 = vector.broadcast %cst_27 : f32 to vector<1x1280xf32>
      %50 = arith.cmpf ogt, %48, %49 : vector<1x1280xf32>
      %51 = arith.extui %50 : vector<1x1280xi1> to vector<1x1280xi32>
      %52 = arith.sitofp %51 : vector<1x1280xi32> to vector<1x1280xf32>
      %53 = arith.truncf %52 : vector<1x1280xf32> to vector<1x1280xbf16>
      %c0_28 = arith.constant 0 : index
      %c0_29 = arith.constant 0 : index
      %54 = vector.load %arg6[%c0_28, %c0_29] : memref<1280x128xbf16, #tpu.memory_space<vmem>>, vector<1280x128xbf16>
      %cst_30 = arith.constant dense<0.000000e+00> : vector<1x128xf32>
      %55 = tpu.matmul %53, %54, %cst_30 {dimension_numbers = #tpu.dot_dimension_numbers<[1], [0], [0], [1], [0, 0, 1, 1], [], []>} : vector<1x1280xbf16>, vector<1280x128xbf16>, vector<1x128xf32> -> vector<1x128xf32>
      %c0_31 = arith.constant 0 : index
      %c0_32 = arith.constant 0 : index
      %56 = vector.load %arg7[%c0_31, %c0_32] : memref<1x128xf32, #tpu.memory_space<vmem>>, vector<1x128xf32>
      %57 = arith.addf %55, %56 : vector<1x128xf32>
      %58 = vector.shape_cast %57 : vector<1x128xf32> to vector<1x1x128xf32>
      %c0_33 = arith.constant 0 : index
      %c0_34 = arith.constant 0 : index
      %c0_35 = arith.constant 0 : index
      %59 = vector.load %arg8[%c0_33, %c0_34, %c0_35] : memref<1x1x128xf32, #tpu.memory_space<vmem>>, vector<1x1x128xf32>
      tpu.vector_store %arg8[%c0_33, %c0_34, %c0_35], %58 {strides = array<i32>} : memref<1x1x128xf32, #tpu.memory_space<vmem>>, vector<1x1x128xf32>,
    } else {
    }
    return
  }
  func.func @transform_0(%arg0: i32, %arg1: i32) -> (i32, i32, i32) {
    %c0_i32 = arith.constant 0 : i32
    %c0_i32_0 = arith.constant 0 : i32
    return %arg0, %arg1, %c0_i32 : i32, i32, i32
  }
  func.func @transform_1(%arg0: i32, %arg1: i32) -> (i32, i32) {
    %c0_i32 = arith.constant 0 : i32
    %c0_i32_0 = arith.constant 0 : i32
    %c0_i32_1 = arith.constant 0 : i32
    return %c0_i32, %c0_i32_0 : i32, i32
  }
  func.func @transform_2(%arg0: i32, %arg1: i32) -> (i32, i32) {
    %c0_i32 = arith.constant 0 : i32
    %c0_i32_0 = arith.constant 0 : i32
    %c0_i32_1 = arith.constant 0 : i32
    return %c0_i32, %c0_i32_0 : i32, i32
  }
  func.func @transform_3(%arg0: i32, %arg1: i32) -> (i32, i32) {
    %c0_i32 = arith.constant 0 : i32
    %c0_i32_0 = arith.constant 0 : i32
    %c0_i32_1 = arith.constant 0 : i32
    return %c0_i32, %c0_i32_0 : i32, i32
  }
  func.func @transform_4(%arg0: i32, %arg1: i32) -> (i32, i32) {
    %c0_i32 = arith.constant 0 : i32
    %c0_i32_0 = arith.constant 0 : i32
    %c0_i32_1 = arith.constant 0 : i32
    return %c0_i32, %c0_i32_0 : i32, i32
  }
  func.func @transform_5(%arg0: i32, %arg1: i32) -> (i32, i32) {
    %c0_i32 = arith.constant 0 : i32
    %c0_i32_0 = arith.constant 0 : i32
    %c0_i32_1 = arith.constant 0 : i32
    return %c0_i32, %c0_i32_0 : i32, i32
  }
  func.func @transform_6(%arg0: i32, %arg1: i32) -> (i32, i32, i32) {
    %c0_i32 = arith.constant 0 : i32
    %c0_i32_0 = arith.constant 0 : i32
    %c0_i32_1 = arith.constant 0 : i32
    return %arg0, %c0_i32, %c0_i32_0 : i32, i32, i32
  }
}

</mosaic_0001>

<llo_original>
// kernel: forward.1
$region0: #{forward.1}
  #allocation0 [shape = 'u32[]', space=smem, size = 0x4, offset = 0x4, fixed_abs, tag = 'smem constant byte address 0x4 - core index']
  #allocation1 [shape = 'u32[144,128]{1,0:T(1,128)}', space=vmem, size = 0x12000, scoped, tag = 'internal scratch']
  #allocation2 [shape = 'f32[8,1280]{1,0:T(8,128)}', space=vmem, size = 0xa000, scoped, tag = 'scratch operand']
  %s0 = inlined_call_operand.vmem [shape: bf16[2,64,32], index: 0, kind: input, shape index: {}]
  %s1 = inlined_call_operand.vmem [shape: f32[1,32], index: 1, kind: input, shape index: {}]
  %s2 = inlined_call_operand.vmem [shape: bf16[32,1280], index: 2, kind: input, shape index: {}]
  %s3 = inlined_call_operand.vmem [shape: f32[1,1280], index: 3, kind: input, shape index: {}]
  %s4 = inlined_call_operand.vmem [shape: bf16[1280,128], index: 4, kind: input, shape index: {}]
  %s5 = inlined_call_operand.vmem [shape: f32[1,128], index: 5, kind: input, shape index: {}]
  %s6 = inlined_call_operand.hbm [shape: f32[2,1,128], index: 6, kind: output, shape index: {}]
  %s7 = sld [smem:[#allocation0]]
  $region65: #{forward.1} parent=0
    _
  %s9 = ssub.s32 1, %s7
  %s10 = scalar_select 0, %s9, %s7
  $region1: #{forward.1} parent=0
    #allocation3 [shape = 'u8[1024]{0}', space=vmem, size = 0x400, scoped, tag = 'output window, operand 0']
    #allocation4 [shape = 's32[2]{0}', space=sflag, size = 0x8, scoped, tag = 'scoped memory for forward.1']
    %11 = vsyncpa [#allocation4], 0
    %s12 = scalar_lea.sflag [#allocation4], 1
    %13 = vsyncpa %s12, 0
    loop: start=0, step=1, limit=4
    $region2: #{forward.1} parent=1 // loop_pre_header
      _
    $region3: #{forward.1} parent=1 // loop_header
      %s15 = sphi 0, %s19
      %p16 = scmp.ge.s32.totalorder %s15, 4
      %s22 = sphi 0, %s34
      %s23 = sphi 0, %s30
      %s24 = sphi 0, %s22
      %s25 = sphi 0, %s23
      %s26 = sphi 0, %s24
      %s27 = sphi 0, %s25
      %s39 = sphi 0, %s41
      %s42 = sphi 0, %s39
      %s43 = sphi 0, %s42
      %s59 = sphi 0, %s43
      %s63 = sphi 0, %s63
      %s65 = sphi 0, %s63
      %s66 = sphi 0, %s65
      %s80 = sphi 0, %s66
      %s84 = sphi 0, %s84
      %s86 = sphi 0, %s84
      %s87 = sphi 0, %s86
      %s101 = sphi 0, %s87
      %s105 = sphi 0, %s105
      %s107 = sphi 0, %s105
      %s108 = sphi 0, %s107
      %s122 = sphi 0, %s108
      %s126 = sphi 0, %s126
      %s128 = sphi 0, %s126
      %s129 = sphi 0, %s128
      %s143 = sphi 0, %s129
      %s147 = sphi 0, %s147
      %s149 = sphi 0, %s147
      %s150 = sphi 0, %s149
      %s164 = sphi 0, %s150
      %s170 = sphi 0, %s172
      %s173 = sphi 0, %s170
      %s174 = sphi 0, %s173
      %s190 = sphi 0, %s174
    $region4: #{forward.1} parent=1 // loop_header_branch
      %18 = sbr.rel (%p16) target = $region8
    $region5: #{forward.1} parent=1 // loop_body
      %s20 = ssub.s32 %s15, 1
      %s21 = ssub.s32 %s15, 2
      %s28 = sadd.s32 1, %s23
      %p29 = scmp.ge.s32.totalorder %s28, 1
      %s30 = scalar_select %p29, 0, %s28
      %s31 = sadd.s32 1, %s22
      %s32 = scalar_select %p29, %s31, %s22
      %p33 = scmp.ge.s32.totalorder %s32, 2
      %s34 = scalar_select %p33, 0, %s32
      %s35 = ssub.s32 %s22, %s34
      %s36 = ssub.s32 %s23, %s30
      %s37 = sor.u32 %s35, %s36
      %p38 = scmp.eq.s32.totalorder %s37, 0
      %s40 = sadd.s32 %s39, 1
      %s41 = scalar_select %p38, %s39, %s40
      %p44 = pneg %p38
      %p45 = scmp.eq.s32.totalorder %s15, 1
      %p46 = por %p44, %p45
      %p47 = scmp.ne.s32.totalorder %s39, %s42
      %p48 = scmp.eq.s32.totalorder %s15, 0
      %p49 = por %p47, %p48
      %p50 = scmp.ne.s32.totalorder %s39, %s42
      %p51 = scmp.eq.s32.totalorder %s20, 1
      %p52 = por %p50, %p51
      %p53 = scmp.ne.s32.totalorder %s42, %s43
      %p54 = scmp.eq.s32.totalorder %s20, 0
      %p55 = por %p53, %p54
      %p56 = scmp.ne.s32.totalorder %s42, %s43
      %p57 = scmp.eq.s32.totalorder %s21, 1
      %p58 = por %p56, %p57
      %p60 = scmp.ne.s32.totalorder %s43, %s59
      %p61 = scmp.eq.s32.totalorder %s21, 0
      %p62 = por %p60, %p61
      %s64 = sadd.s32 %s63, 1
      %p67 = scmp.eq.s32.totalorder %s15, 1
      %p68 = scmp.ne.s32.totalorder %s63, %s65
      %p69 = scmp.eq.s32.totalorder %s15, 0
      %p70 = por %p68, %p69
      %p71 = scmp.ne.s32.totalorder %s63, %s65
      %p72 = scmp.eq.s32.totalorder %s20, 1
      %p73 = por %p71, %p72
      %p74 = scmp.ne.s32.totalorder %s65, %s66
      %p75 = scmp.eq.s32.totalorder %s20, 0
      %p76 = por %p74, %p75
      %p77 = scmp.ne.s32.totalorder %s65, %s66
      %p78 = scmp.eq.s32.totalorder %s21, 1
      %p79 = por %p77, %p78
      %p81 = scmp.ne.s32.totalorder %s66, %s80
      %p82 = scmp.eq.s32.totalorder %s21, 0
      %p83 = por %p81, %p82
      %s85 = sadd.s32 %s84, 1
      %p88 = scmp.eq.s32.totalorder %s15, 1
      %p89 = scmp.ne.s32.totalorder %s84, %s86
      %p90 = scmp.eq.s32.totalorder %s15, 0
      %p91 = por %p89, %p90
      %p92 = scmp.ne.s32.totalorder %s84, %s86
      %p93 = scmp.eq.s32.totalorder %s20, 1
      %p94 = por %p92, %p93
      %p95 = scmp.ne.s32.totalorder %s86, %s87
      %p96 = scmp.eq.s32.totalorder %s20, 0
      %p97 = por %p95, %p96
      %p98 = scmp.ne.s32.totalorder %s86, %s87
      %p99 = scmp.eq.s32.totalorder %s21, 1
      %p100 = por %p98, %p99
      %p102 = scmp.ne.s32.totalorder %s87, %s101
      %p103 = scmp.eq.s32.totalorder %s21, 0
      %p104 = por %p102, %p103
      %s106 = sadd.s32 %s105, 1
      %p109 = scmp.eq.s32.totalorder %s15, 1
      %p110 = scmp.ne.s32.totalorder %s105, %s107
      %p111 = scmp.eq.s32.totalorder %s15, 0
      %p112 = por %p110, %p111
      %p113 = scmp.ne.s32.totalorder %s105, %s107
      %p114 = scmp.eq.s32.totalorder %s20, 1
      %p115 = por %p113, %p114
      %p116 = scmp.ne.s32.totalorder %s107, %s108
      %p117 = scmp.eq.s32.totalorder %s20, 0
      %p118 = por %p116, %p117
      %p119 = scmp.ne.s32.totalorder %s107, %s108
      %p120 = scmp.eq.s32.totalorder %s21, 1
      %p121 = por %p119, %p120
      %p123 = scmp.ne.s32.totalorder %s108, %s122
      %p124 = scmp.eq.s32.totalorder %s21, 0
      %p125 = por %p123, %p124
      %s127 = sadd.s32 %s126, 1
      %p130 = scmp.eq.s32.totalorder %s15, 1
      %p131 = scmp.ne.s32.totalorder %s126, %s128
      %p132 = scmp.eq.s32.totalorder %s15, 0
      %p133 = por %p131, %p132
      %p134 = scmp.ne.s32.totalorder %s126, %s128
      %p135 = scmp.eq.s32.totalorder %s20, 1
      %p136 = por %p134, %p135
      %p137 = scmp.ne.s32.totalorder %s128, %s129
      %p138 = scmp.eq.s32.totalorder %s20, 0
      %p139 = por %p137, %p138
      %p140 = scmp.ne.s32.totalorder %s128, %s129
      %p141 = scmp.eq.s32.totalorder %s21, 1
      %p142 = por %p140, %p141
      %p144 = scmp.ne.s32.totalorder %s129, %s143
      %p145 = scmp.eq.s32.totalorder %s21, 0
      %p146 = por %p144, %p145
      %s148 = sadd.s32 %s147, 1
      %p151 = scmp.eq.s32.totalorder %s15, 1
      %p152 = scmp.ne.s32.totalorder %s147, %s149
      %p153 = scmp.eq.s32.totalorder %s15, 0
      %p154 = por %p152, %p153
      %p155 = scmp.ne.s32.totalorder %s147, %s149
      %p156 = scmp.eq.s32.totalorder %s20, 1
      %p157 = por %p155, %p156
      %p158 = scmp.ne.s32.totalorder %s149, %s150
      %p159 = scmp.eq.s32.totalorder %s20, 0
      %p160 = por %p158, %p159
      %p161 = scmp.ne.s32.totalorder %s149, %s150
      %p162 = scmp.eq.s32.totalorder %s21, 1
      %p163 = por %p161, %p162
      %p165 = scmp.ne.s32.totalorder %s150, %s164
      %p166 = scmp.eq.s32.totalorder %s21, 0
      %p167 = por %p165, %p166
      %s168 = ssub.s32 %s22, %s34
      %p169 = scmp.eq.s32.totalorder %s168, 0
      %s171 = sadd.s32 %s170, 1
      %s172 = scalar_select %p169, %s170, %s171
      %p175 = pneg %p169
      %p176 = scmp.eq.s32.totalorder %s15, 1
      %p177 = por %p175, %p176
      %p178 = scmp.ne.s32.totalorder %s170, %s173
      %p179 = scmp.eq.s32.totalorder %s15, 0
      %p180 = por %p178, %p179
      %p181 = scmp.ne.s32.totalorder %s170, %s173
      %p182 = scmp.eq.s32.totalorder %s20, 1
      %p183 = por %p181, %p182
      %p184 = scmp.ne.s32.totalorder %s173, %s174
      %p185 = scmp.eq.s32.totalorder %s20, 0
      %p186 = por %p184, %p185
      %p187 = scmp.ne.s32.totalorder %s173, %s174
      %p188 = scmp.eq.s32.totalorder %s21, 1
      %p189 = por %p187, %p188
      %p191 = scmp.ne.s32.totalorder %s174, %s190
      %p192 = scmp.eq.s32.totalorder %s21, 0
      %p193 = por %p191, %p192
      %p194 = scmp.le.s32.totalorder 1, %s15
      %p195 = scmp.lt.s32.totalorder %s15, 3
      %p196 = pnand %p194, %p195
      %p197 = pneg %p196
      // Predicated region
      $region9: #{forward.1} parent=5 // pred_check
        _
      $region10: #{forward.1} parent=5 // pred_check_branch
        %199 = sbr.rel (%p196) target = $region12
      $region11: #{forward.1} parent=5 // pred_region
        %s200 = ssub.s32 %s15, 1
        // Predicated region
        $region13: #{forward.1} parent=11 // pred_check
          %p201 = pneg %p76
        $region14: #{forward.1} parent=11 // pred_check_branch
          %203 = sbr.rel (%p201) target = $region16
        $region15: #{forward.1} parent=11 // pred_region
          _
        $region16: #{forward.1} parent=11 // pred_fallthru
          _
        // Predicated region
        $region17: #{forward.1} parent=11 // pred_check
          %p204 = pneg %p97
        $region18: #{forward.1} parent=11 // pred_check_branch
          %206 = sbr.rel (%p204) target = $region20
        $region19: #{forward.1} parent=11 // pred_region
          _
        $region20: #{forward.1} parent=11 // pred_fallthru
          _
        // Predicated region
        $region21: #{forward.1} parent=11 // pred_check
          %p207 = pneg %p118
        $region22: #{forward.1} parent=11 // pred_check_branch
          %209 = sbr.rel (%p207) target = $region24
        $region23: #{forward.1} parent=11 // pred_region
          _
        $region24: #{forward.1} parent=11 // pred_fallthru
          _
        // Predicated region
        $region25: #{forward.1} parent=11 // pred_check
          %p210 = pneg %p139
        $region26: #{forward.1} parent=11 // pred_check_branch
          %212 = sbr.rel (%p210) target = $region28
        $region27: #{forward.1} parent=11 // pred_region
          _
        $region28: #{forward.1} parent=11 // pred_fallthru
          _
        // Predicated region
        $region29: #{forward.1} parent=11 // pred_check
          %p213 = pneg %p160
        $region30: #{forward.1} parent=11 // pred_check_branch
          %215 = sbr.rel (%p213) target = $region32
        $region31: #{forward.1} parent=11 // pred_region
          _
        $region32: #{forward.1} parent=11 // pred_fallthru
          _
      $region12: #{forward.1} parent=5 // pred_fallthru
        _
      %p216 = scmp.lt.s32.totalorder %s15, 2
      // Predicated region
      $region33: #{forward.1} parent=5 // pred_check
        %p217 = pneg %p216
      $region34: #{forward.1} parent=5 // pred_check_branch
        %219 = sbr.rel (%p217) target = $region36
      $region35: #{forward.1} parent=5 // pred_region
        // Predicated region
        $region37: #{forward.1} parent=35 // pred_check
          %p220 = pneg %p49
        $region38: #{forward.1} parent=35 // pred_check_branch
          %222 = sbr.rel (%p220) target = $region40
        $region39: #{forward.1} parent=35 // pred_region
          %s223 = smul.u32 8, %s23
          %p224 = scmp.lt.s32.totalorder %s22, 1
          %s225 = scalar_select %p224, %s22, 1
          %p226 = scmp.lt.s32.totalorder %s223, 7
          %s227 = scalar_select %p226, %s223, 7
          %s228 = smul.addr %s225, 8
          %s229 = sadd.s32 %s227, %s228
          %s230 = smul.addr %s229, 4
          %s231 = scalar_lea.vmem %s0, %s230
          %s232 = smul.u32 8, %s23
        $region40: #{forward.1} parent=35 // pred_fallthru
          _
      $region36: #{forward.1} parent=5 // pred_fallthru
        _
      %p233 = scmp.le.s32.totalorder 1, %s15
      %p234 = scmp.lt.s32.totalorder %s15, 3
      %p235 = pnand %p233, %p234
      %p236 = pneg %p235
      // Predicated region
      $region41: #{forward.1} parent=5 // pred_check
        _
      $region42: #{forward.1} parent=5 // pred_check_branch
        %238 = sbr.rel (%p235) target = $region44
      $region43: #{forward.1} parent=5 // pred_region
        %s239 = ssub.s32 %s15, 1
        %s240 = smul.u32 8, %s25
        %p241 = scmp.lt.s32.totalorder %s24, 1
        %s242 = scalar_select %p241, %s24, 1
        %p243 = scmp.lt.s32.totalorder %s240, 7
        %s244 = scalar_select %p243, %s240, 7
        %s245 = smul.addr %s242, 8
        %s246 = sadd.s32 %s244, %s245
        %s247 = smul.addr %s246, 4
        %s248 = scalar_lea.vmem %s0, %s247
        %p249 = pneg %p55
        %p250 = pneg %p52
        %p251 = pneg %p76
        %p252 = pneg %p73
        %p253 = pneg %p97
        %p254 = pneg %p94
        %p255 = pneg %p118
        %p256 = pneg %p115
        %p257 = pneg %p139
        %p258 = pneg %p136
        %p259 = pneg %p160
        %p260 = pneg %p157
        %p261 = pneg %p186
        %p262 = pneg %p183
        %s263 = sand.u32 %s173, 1
        %s264 = scalar_lea.sflag [#allocation4], %s263
        %s265 = sand.u32 %s173, 1
        %s266 = scalar_lea.vmem [#allocation3], %s265
        %s267 = smul.u32 8, %s25
        %p268 = scmp.lt.s32.totalorder %s24, 1
        %s269 = scalar_select %p268, %s24, 1
        %p270 = scmp.lt.s32.totalorder %s267, 7
        %s271 = scalar_select %p270, %s267, 7
        %s272 = smul.addr %s269, 8
        %s273 = sadd.s32 %s271, %s272
        %s274 = smul.addr %s273, 4
        %s275 = scalar_lea.vmem %s0, %s274
        %s276 = smul.u32 8, %s25
        %p278 = scmp.eq.s32.totalorder %s25, 0
        // Predicated region
        $region45: #{forward.1} parent=43 // pred_check
          %p279 = pneg %p278
        $region46: #{forward.1} parent=43 // pred_check_branch
          %281 = sbr.rel (%p279) target = $region48
        $region47: #{forward.1} parent=43 // pred_region
          %282 = vst [vmem:[#allocation2] sm:$0xff] 0.0
          %283 = vst [vmem:[#allocation2 + $0x8] sm:$0xff] 0.0
          %284 = vst [vmem:[#allocation2 + $0x10] sm:$0xff] 0.0
          %285 = vst [vmem:[#allocation2 + $0x18] sm:$0xff] 0.0
          %286 = vst [vmem:[#allocation2 + $0x20] sm:$0xff] 0.0
          %287 = vst [vmem:[#allocation2 + $0x28] sm:$0xff] 0.0
          %288 = vst [vmem:[#allocation2 + $0x30] sm:$0xff] 0.0
          %289 = vst [vmem:[#allocation2 + $0x38] sm:$0xff] 0.0
          %290 = vst [vmem:[#allocation2 + $0x40] sm:$0xff] 0.0
          %291 = vst [vmem:[#allocation2 + $0x48] sm:$0xff] 0.0
        $region48: #{forward.1} parent=43 // pred_fallthru
          _
        %v292 = vld [vmem:[%s275] sm:$0xf]
        %v293 = vld [vmem:[%s275 + $0x4] sm:$0xf]
        %v294 = vld [vmem:[%s275 + $0x8] sm:$0xf]
        %v295 = vld [vmem:[%s275 + $0xc] sm:$0xf]
        %v296 = vld [vmem:[%s275 + $0x10] sm:$0xf]
        %v297 = vld [vmem:[%s275 + $0x14] sm:$0xf]
        %v298 = vld [vmem:[%s275 + $0x18] sm:$0xf]
        %v299 = vld [vmem:[%s275 + $0x1c] sm:$0xf]
        %v300 = vunpack.c.l.bf16 %v292
        %v301 = vunpack.c.l.bf16 %v293
        %v302 = vunpack.c.l.bf16 %v294
        %v303 = vunpack.c.l.bf16 %v295
        %v304 = vunpack.c.l.bf16 %v296
        %v305 = vunpack.c.l.bf16 %v297
        %v306 = vunpack.c.l.bf16 %v298
        %v307 = vunpack.c.l.bf16 %v299
        %v308 = vld [vmem:[%s1] sm:$0x1]
        %v310 = vlaneseq
        %v311 = vshrl.u32 %v310, 7
        %v312 = vsub.s32 0, %v311
        %v313 = vrot.slane %v308, %v312
        %v315 = vadd.f32 %v300, %v313
        %v316 = vadd.f32 %v301, %v313
        %v317 = vadd.f32 %v302, %v313
        %v318 = vadd.f32 %v303, %v313
        %v319 = vadd.f32 %v304, %v313
        %v320 = vadd.f32 %v305, %v313
        %v321 = vadd.f32 %v306, %v313
        %v322 = vadd.f32 %v307, %v313
        %v323 = vmul.f32 %v315, 0.5
        %v324 = vmul.f32 %v316, 0.5
        %v325 = vmul.f32 %v317, 0.5
        %v326 = vmul.f32 %v318, 0.5
        %v327 = vmul.f32 %v319, 0.5
        %v328 = vmul.f32 %v320, 0.5
        %v329 = vmul.f32 %v321, 0.5
        %v330 = vmul.f32 %v322, 0.5
        %v331 = vtanh.pop %v323
        %v332 = vtanh.pop %v324
        %v333 = vtanh.pop %v325
        %v334 = vtanh.pop %v326
        %v335 = vtanh.pop %v327
        %v336 = vtanh.pop %v328
        %v337 = vtanh.pop %v329
        %v338 = vtanh.pop %v330
        %v339 = vadd.f32 %v331, 1.0
        %v340 = vadd.f32 %v332, 1.0
        %v341 = vadd.f32 %v333, 1.0
        %v342 = vadd.f32 %v334, 1.0
        %v343 = vadd.f32 %v335, 1.0
        %v344 = vadd.f32 %v336, 1.0
        %v345 = vadd.f32 %v337, 1.0
        %v346 = vadd.f32 %v338, 1.0
        %v347 = vmul.f32 %v339, 0.5
        %v348 = vmul.f32 %v340, 0.5
        %v349 = vmul.f32 %v341, 0.5
        %v350 = vmul.f32 %v342, 0.5
        %v351 = vmul.f32 %v343, 0.5
        %v352 = vmul.f32 %v344, 0.5
        %v353 = vmul.f32 %v345, 0.5
        %v354 = vmul.f32 %v346, 0.5
        %v355 = vmul.f32 %v315, %v347
        %v356 = vmul.f32 %v316, %v348
        %v357 = vmul.f32 %v317, %v349
        %v358 = vmul.f32 %v318, %v350
        %v359 = vmul.f32 %v319, %v351
        %v360 = vmul.f32 %v320, %v352
        %v361 = vmul.f32 %v321, %v353
        %v362 = vmul.f32 %v322, %v354
        %v363 = vpack.c.bf16 %v356, %v355
        %v364 = vpack.c.bf16 %v358, %v357
        %v365 = vpack.c.bf16 %v360, %v359
        %v366 = vpack.c.bf16 %v362, %v361
        %v367 = vld [vmem:[%s2] sm:$0xff]
        %v368 = vld [vmem:[%s2 + $0x8] sm:$0xff]
        %v369 = vld [vmem:[%s2 + $0x10] sm:$0xff]
        %v370 = vld [vmem:[%s2 + $0x18] sm:$0xff]
        %v371 = vld [vmem:[%s2 + $0x20] sm:$0xff]
        %v372 = vld [vmem:[%s2 + $0x28] sm:$0xff]
        %v373 = vld [vmem:[%s2 + $0x30] sm:$0xff]
        %v374 = vld [vmem:[%s2 + $0x38] sm:$0xff]
        %v375 = vld [vmem:[%s2 + $0x40] sm:$0xff]
        %v376 = vld [vmem:[%s2 + $0x48] sm:$0xff]
        %v377 = vld [vmem:[%s2 + $0x50] sm:$0xff]
        %v378 = vld [vmem:[%s2 + $0x58] sm:$0xff]
        %v379 = vld [vmem:[%s2 + $0x60] sm:$0xff]
        %v380 = vld [vmem:[%s2 + $0x68] sm:$0xff]
        %v381 = vld [vmem:[%s2 + $0x70] sm:$0xff]
        %v382 = vld [vmem:[%s2 + $0x78] sm:$0xff]
        %v383 = vld [vmem:[%s2 + $0x80] sm:$0xff]
        %v384 = vld [vmem:[%s2 + $0x88] sm:$0xff]
        %v385 = vld [vmem:[%s2 + $0x90] sm:$0xff]
        %v386 = vld [vmem:[%s2 + $0x98] sm:$0xff]
        %v387 = vld [vmem:[%s3] sm:$0xff]
        %v388 = vld [vmem:[%s3 + $0x8] sm:$0x3]
        %v391 = vlaneseq
        %v392 = vshrl.u32 %v391, 7
        %v393 = vsub.s32 0, %v392
        %v394 = vrot.slane %v387, %v393
        %v395 = vlaneseq
        %v396 = vshrl.u32 %v395, 7
        %v397 = vsub.s32 1, %v396
        %v398 = vrot.slane %v387, %v397
        %v399 = vlaneseq
        %v400 = vshrl.u32 %v399, 7
        %v401 = vsub.s32 2, %v400
        %v402 = vrot.slane %v387, %v401
        %v403 = vlaneseq
        %v404 = vshrl.u32 %v403, 7
        %v405 = vsub.s32 3, %v404
        %v406 = vrot.slane %v387, %v405
        %v407 = vlaneseq
        %v408 = vshrl.u32 %v407, 7
        %v409 = vsub.s32 4, %v408
        %v410 = vrot.slane %v387, %v409
        %v411 = vlaneseq
        %v412 = vshrl.u32 %v411, 7
        %v413 = vsub.s32 5, %v412
        %v414 = vrot.slane %v387, %v413
        %v415 = vlaneseq
        %v416 = vshrl.u32 %v415, 7
        %v417 = vsub.s32 6, %v416
        %v418 = vrot.slane %v387, %v417
        %v419 = vlaneseq
        %v420 = vshrl.u32 %v419, 7
        %v421 = vsub.s32 7, %v420
        %v422 = vrot.slane %v387, %v421
        %v423 = vlaneseq
        %v424 = vshrl.u32 %v423, 7
        %v425 = vsub.s32 0, %v424
        %v426 = vrot.slane %v388, %v425
        %v427 = vlaneseq
        %v428 = vshrl.u32 %v427, 7
        %v429 = vsub.s32 1, %v428
        %v430 = vrot.slane %v388, %v429
        %v461 = vunpack.c.l.b16 %v367
        %v462 = vunpack.c.h.b16 %v367
        %v463 = vunpack.c.l.b16 %v368
        %v464 = vunpack.c.h.b16 %v368
        %v465 = vunpack.c.l.b16 %v369
        %v466 = vunpack.c.h.b16 %v369
        %v467 = vunpack.c.l.b16 %v370
        %v468 = vunpack.c.h.b16 %v370
        %v469 = vunpack.c.l.b16 %v371
        %v470 = vunpack.c.h.b16 %v371
        %v471 = vunpack.c.l.b16 %v372
        %v472 = vunpack.c.h.b16 %v372
        %v473 = vunpack.c.l.b16 %v373
        %v474 = vunpack.c.h.b16 %v373
        %v475 = vunpack.c.l.b16 %v374
        %v476 = vunpack.c.h.b16 %v374
        %v477 = vunpack.c.l.b16 %v375
        %v478 = vunpack.c.h.b16 %v375
        %v479 = vunpack.c.l.b16 %v376
        %v480 = vunpack.c.h.b16 %v376
        %v481 = vunpack.c.l.b16 %v377
        %v482 = vunpack.c.h.b16 %v377
        %v483 = vunpack.c.l.b16 %v378
        %v484 = vunpack.c.h.b16 %v378
        %v485 = vunpack.c.l.b16 %v379
        %v486 = vunpack.c.h.b16 %v379
        %v487 = vunpack.c.l.b16 %v380
        %v488 = vunpack.c.h.b16 %v380
        %v489 = vunpack.c.l.b16 %v381
        %v490 = vunpack.c.h.b16 %v381
        %v491 = vunpack.c.l.b16 %v382
        %v492 = vunpack.c.h.b16 %v382
        %v493 = vunpack.c.l.b16 %v383
        %v494 = vunpack.c.h.b16 %v383
        %v495 = vunpack.c.l.b16 %v384
        %v496 = vunpack.c.h.b16 %v384
        %v497 = vunpack.c.l.b16 %v385
        %v498 = vunpack.c.h.b16 %v385
        %v499 = vunpack.c.l.b16 %v386
        %v500 = vunpack.c.h.b16 %v386
        %v501 = vpack.c.b16 %v471, %v461
        %v502 = vpack.c.b16 %v472, %v462
        %v503 = vpack.c.b16 %v473, %v463
        %v504 = vpack.c.b16 %v474, %v464
        %v505 = vpack.c.b16 %v475, %v465
        %v506 = vpack.c.b16 %v476, %v466
        %v507 = vpack.c.b16 %v477, %v467
        %v508 = vpack.c.b16 %v478, %v468
        %v509 = vpack.c.b16 %v479, %v469
        %v510 = vpack.c.b16 %v480, %v470
        %v511 = vpack.c.b16 %v491, %v481
        %v512 = vpack.c.b16 %v492, %v482
        %v513 = vpack.c.b16 %v493, %v483
        %v514 = vpack.c.b16 %v494, %v484
        %v515 = vpack.c.b16 %v495, %v485
        %v516 = vpack.c.b16 %v496, %v486
        %v517 = vpack.c.b16 %v497, %v487
        %v518 = vpack.c.b16 %v498, %v488
        %v519 = vpack.c.b16 %v499, %v489
        %v520 = vpack.c.b16 %v500, %v490
        %vm541 = vcmask 261120
        %v543 = vsel %vm541, %v363, 0
        %v546 = vsel %vm541, %v364, 0
        %v549 = vsel %vm541, %v365, 0
        %v552 = vsel %vm541, %v366, 0
        %554 = vmatprep.subr.bf16.mxu0 0
        %555 = vmatpush1.bf16.msra.mxu0 0
        %556 = vmatprep.subr.bf16.mxu0 0
        %557 = vmatpush1.bf16.msra.mxu0 0
        %558 = vmatprep.subr.bf16.mxu0 0
        %559 = vmatpush1.bf16.msra.mxu0 0
        %560 = vmatprep.subr.bf16.mxu0 0
        %561 = vmatpush1.bf16.msra.mxu0 0
        %562 = vmatprep.subr.bf16.mxu0 0
        %563 = vmatpush1.bf16.msra.mxu0 0
        %564 = vmatprep.subr.bf16.mxu0 0
        %565 = vmatpush1.bf16.msra.mxu0 0
        %566 = vmatprep.subr.bf16.mxu0 %v512
        %567 = vmatpush1.bf16.msra.mxu0 %v511
        %568 = vmatprep.subr.bf16.mxu0 %v502
        %569 = vmatpush1.bf16.msra.mxu0 %v501
        %570 = vmatprep.subr.bf16.mxu0 0
        %571 = vmatpush2.bf16.msra.mxu0 0
        %572 = vmatprep.subr.bf16.mxu0 0
        %573 = vmatpush2.bf16.msra.mxu0 0
        %574 = vmatprep.subr.bf16.mxu0 0
        %575 = vmatpush2.bf16.msra.mxu0 0
        %576 = vmatprep.subr.bf16.mxu0 0
        %577 = vmatpush2.bf16.msra.mxu0 0
        %578 = vmatprep.subr.bf16.mxu0 0
        %579 = vmatpush2.bf16.msra.mxu0 0
        %580 = vmatprep.subr.bf16.mxu0 0
        %581 = vmatpush2.bf16.msra.mxu0 0
        %582 = vmatprep.subr.bf16.mxu0 0
        %583 = vmatpush2.bf16.msra.mxu0 0
        %584 = vmatprep.subr.bf16.mxu0 0
        %585 = vmatpush2.bf16.msra.mxu0 0
        %586 = vmatprep.mubr.bf16.mxu0 0
        %587 = vmatmul.mubr.bf16.gmra.mxu0 %v543
        %v588 = vpop.f32.mrf.mxu0
        %v589 = vadd.f32 %v394, %v588
        %v590 = vpop.f32.mrf.mxu0
        %v591 = vadd.f32 %v398, %v590
        %v592 = vpop.f32.mrf.mxu0
        %v593 = vadd.f32 %v394, %v592
        %v594 = vpop.f32.mrf.mxu0
        %v595 = vadd.f32 %v398, %v594
        %596 = vmatprep.mubr.bf16.mxu0 0
        %597 = vmatmul.mubr.bf16.gmra.mxu0 %v546
        %v598 = vpop.f32.mrf.mxu0
        %v599 = vadd.f32 %v394, %v598
        %v600 = vpop.f32.mrf.mxu0
        %v601 = vadd.f32 %v398, %v600
        %v602 = vpop.f32.mrf.mxu0
        %v603 = vadd.f32 %v394, %v602
        %v604 = vpop.f32.mrf.mxu0
        %v605 = vadd.f32 %v398, %v604
        %606 = vmatprep.mubr.bf16.mxu0 0
        %607 = vmatmul.mubr.bf16.gmra.mxu0 %v549
        %v608 = vpop.f32.mrf.mxu0
        %v609 = vadd.f32 %v394, %v608
        %v610 = vpop.f32.mrf.mxu0
        %v611 = vadd.f32 %v398, %v610
        %v612 = vpop.f32.mrf.mxu0
        %v613 = vadd.f32 %v394, %v612
        %v614 = vpop.f32.mrf.mxu0
        %v615 = vadd.f32 %v398, %v614
        %616 = vmatprep.mubr.bf16.mxu0 0
        %617 = vmatmul.mubr.bf16.gmra.mxu0 %v552
        %v618 = vpop.f32.mrf.mxu0
        %v619 = vadd.f32 %v394, %v618
        %v620 = vpop.f32.mrf.mxu0
        %v621 = vadd.f32 %v398, %v620
        %v622 = vpop.f32.mrf.mxu0
        %v623 = vadd.f32 %v394, %v622
        %v624 = vpop.f32.mrf.mxu0
        %v625 = vadd.f32 %v398, %v624
        %626 = vdwg.mxu0
        %627 = vmatprep.subr.bf16.mxu0 0
        %628 = vmatpush1.bf16.msra.mxu0 0
        %629 = vmatprep.subr.bf16.mxu0 0
        %630 = vmatpush1.bf16.msra.mxu0 0
        %631 = vmatprep.subr.bf16.mxu0 0
        %632 = vmatpush1.bf16.msra.mxu0 0
        %633 = vmatprep.subr.bf16.mxu0 0
        %634 = vmatpush1.bf16.msra.mxu0 0
        %635 = vmatprep.subr.bf16.mxu0 0
        %636 = vmatpush1.bf16.msra.mxu0 0
        %637 = vmatprep.subr.bf16.mxu0 0
        %638 = vmatpush1.bf16.msra.mxu0 0
        %639 = vmatprep.subr.bf16.mxu0 %v514
        %640 = vmatpush1.bf16.msra.mxu0 %v513
        %641 = vmatprep.subr.bf16.mxu0 %v504
        %642 = vmatpush1.bf16.msra.mxu0 %v503
        %643 = vmatprep.subr.bf16.mxu0 0
        %644 = vmatpush2.bf16.msra.mxu0 0
        %645 = vmatprep.subr.bf16.mxu0 0
        %646 = vmatpush2.bf16.msra.mxu0 0
        %647 = vmatprep.subr.bf16.mxu0 0
        %648 = vmatpush2.bf16.msra.mxu0 0
        %649 = vmatprep.subr.bf16.mxu0 0
        %650 = vmatpush2.bf16.msra.mxu0 0
        %651 = vmatprep.subr.bf16.mxu0 0
        %652 = vmatpush2.bf16.msra.mxu0 0
        %653 = vmatprep.subr.bf16.mxu0 0
        %654 = vmatpush2.bf16.msra.mxu0 0
        %655 = vmatprep.subr.bf16.mxu0 0
        %656 = vmatpush2.bf16.msra.mxu0 0
        %657 = vmatprep.subr.bf16.mxu0 0
        %658 = vmatpush2.bf16.msra.mxu0 0
        %659 = vmatprep.mubr.bf16.mxu0 0
        %660 = vmatmul.mubr.bf16.gmra.mxu0 %v543
        %v661 = vpop.f32.mrf.mxu0
        %v662 = vadd.f32 %v402, %v661
        %v663 = vpop.f32.mrf.mxu0
        %v664 = vadd.f32 %v406, %v663
        %v665 = vpop.f32.mrf.mxu0
        %v666 = vadd.f32 %v402, %v665
        %v667 = vpop.f32.mrf.mxu0
        %v668 = vadd.f32 %v406, %v667
        %669 = vmatprep.mubr.bf16.mxu0 0
        %670 = vmatmul.mubr.bf16.gmra.mxu0 %v546
        %v671 = vpop.f32.mrf.mxu0
        %v672 = vadd.f32 %v402, %v671
        %v673 = vpop.f32.mrf.mxu0
        %v674 = vadd.f32 %v406, %v673
        %v675 = vpop.f32.mrf.mxu0
        %v676 = vadd.f32 %v402, %v675
        %v677 = vpop.f32.mrf.mxu0
        %v678 = vadd.f32 %v406, %v677
        %679 = vmatprep.mubr.bf16.mxu0 0
        %680 = vmatmul.mubr.bf16.gmra.mxu0 %v549
        %v681 = vpop.f32.mrf.mxu0
        %v682 = vadd.f32 %v402, %v681
        %v683 = vpop.f32.mrf.mxu0
        %v684 = vadd.f32 %v406, %v683
        %v685 = vpop.f32.mrf.mxu0
        %v686 = vadd.f32 %v402, %v685
        %v687 = vpop.f32.mrf.mxu0
        %v688 = vadd.f32 %v406, %v687
        %689 = vmatprep.mubr.bf16.mxu0 0
        %690 = vmatmul.mubr.bf16.gmra.mxu0 %v552
        %v691 = vpop.f32.mrf.mxu0
        %v692 = vadd.f32 %v402, %v691
        %v693 = vpop.f32.mrf.mxu0
        %v694 = vadd.f32 %v406, %v693
        %v695 = vpop.f32.mrf.mxu0
        %v696 = vadd.f32 %v402, %v695
        %v697 = vpop.f32.mrf.mxu0
        %v698 = vadd.f32 %v406, %v697
        %699 = vdwg.mxu0
        %700 = vmatprep.subr.bf16.mxu0 0
        %701 = vmatpush1.bf16.msra.mxu0 0
        %702 = vmatprep.subr.bf16.mxu0 0
        %703 = vmatpush1.bf16.msra.mxu0 0
        %704 = vmatprep.subr.bf16.mxu0 0
        %705 = vmatpush1.bf16.msra.mxu0 0
        %706 = vmatprep.subr.bf16.mxu0 0
        %707 = vmatpush1.bf16.msra.mxu0 0
        %708 = vmatprep.subr.bf16.mxu0 0
        %709 = vmatpush1.bf16.msra.mxu0 0
        %710 = vmatprep.subr.bf16.mxu0 0
        %711 = vmatpush1.bf16.msra.mxu0 0
        %712 = vmatprep.subr.bf16.mxu0 %v516
        %713 = vmatpush1.bf16.msra.mxu0 %v515
        %714 = vmatprep.subr.bf16.mxu0 %v506
        %715 = vmatpush1.bf16.msra.mxu0 %v505
        %716 = vmatprep.subr.bf16.mxu0 0
        %717 = vmatpush2.bf16.msra.mxu0 0
        %718 = vmatprep.subr.bf16.mxu0 0
        %719 = vmatpush2.bf16.msra.mxu0 0
        %720 = vmatprep.subr.bf16.mxu0 0
        %721 = vmatpush2.bf16.msra.mxu0 0
        %722 = vmatprep.subr.bf16.mxu0 0
        %723 = vmatpush2.bf16.msra.mxu0 0
        %724 = vmatprep.subr.bf16.mxu0 0
        %725 = vmatpush2.bf16.msra.mxu0 0
        %726 = vmatprep.subr.bf16.mxu0 0
        %727 = vmatpush2.bf16.msra.mxu0 0
        %728 = vmatprep.subr.bf16.mxu0 0
        %729 = vmatpush2.bf16.msra.mxu0 0
        %730 = vmatprep.subr.bf16.mxu0 0
        %731 = vmatpush2.bf16.msra.mxu0 0
        %732 = vmatprep.mubr.bf16.mxu0 0
        %733 = vmatmul.mubr.bf16.gmra.mxu0 %v543
        %v734 = vpop.f32.mrf.mxu0
        %v735 = vadd.f32 %v410, %v734
        %v736 = vpop.f32.mrf.mxu0
        %v737 = vadd.f32 %v414, %v736
        %v738 = vpop.f32.mrf.mxu0
        %v739 = vadd.f32 %v410, %v738
        %v740 = vpop.f32.mrf.mxu0
        %v741 = vadd.f32 %v414, %v740
        %742 = vmatprep.mubr.bf16.mxu0 0
        %743 = vmatmul.mubr.bf16.gmra.mxu0 %v546
        %v744 = vpop.f32.mrf.mxu0
        %v745 = vadd.f32 %v410, %v744
        %v746 = vpop.f32.mrf.mxu0
        %v747 = vadd.f32 %v414, %v746
        %v748 = vpop.f32.mrf.mxu0
        %v749 = vadd.f32 %v410, %v748
        %v750 = vpop.f32.mrf.mxu0
        %v751 = vadd.f32 %v414, %v750
        %752 = vmatprep.mubr.bf16.mxu0 0
        %753 = vmatmul.mubr.bf16.gmra.mxu0 %v549
        %v754 = vpop.f32.mrf.mxu0
        %v755 = vadd.f32 %v410, %v754
        %v756 = vpop.f32.mrf.mxu0
        %v757 = vadd.f32 %v414, %v756
        %v758 = vpop.f32.mrf.mxu0
        %v759 = vadd.f32 %v410, %v758
        %v760 = vpop.f32.mrf.mxu0
        %v761 = vadd.f32 %v414, %v760
        %762 = vmatprep.mubr.bf16.mxu0 0
        %763 = vmatmul.mubr.bf16.gmra.mxu0 %v552
        %v764 = vpop.f32.mrf.mxu0
        %v765 = vadd.f32 %v410, %v764
        %v766 = vpop.f32.mrf.mxu0
        %v767 = vadd.f32 %v414, %v766
        %v768 = vpop.f32.mrf.mxu0
        %v769 = vadd.f32 %v410, %v768
        %v770 = vpop.f32.mrf.mxu0
        %v771 = vadd.f32 %v414, %v770
        %772 = vdwg.mxu0
        %773 = vmatprep.subr.bf16.mxu0 0
        %774 = vmatpush1.bf16.msra.mxu0 0
        %775 = vmatprep.subr.bf16.mxu0 0
        %776 = vmatpush1.bf16.msra.mxu0 0
        %777 = vmatprep.subr.bf16.mxu0 0
        %778 = vmatpush1.bf16.msra.mxu0 0
        %779 = vmatprep.subr.bf16.mxu0 0
        %780 = vmatpush1.bf16.msra.mxu0 0
        %781 = vmatprep.subr.bf16.mxu0 0
        %782 = vmatpush1.bf16.msra.mxu0 0
        %783 = vmatprep.subr.bf16.mxu0 0
        %784 = vmatpush1.bf16.msra.mxu0 0
        %785 = vmatprep.subr.bf16.mxu0 %v518
        %786 = vmatpush1.bf16.msra.mxu0 %v517
        %787 = vmatprep.subr.bf16.mxu0 %v508
        %788 = vmatpush1.bf16.msra.mxu0 %v507
        %789 = vmatprep.subr.bf16.mxu0 0
        %790 = vmatpush2.bf16.msra.mxu0 0
        %791 = vmatprep.subr.bf16.mxu0 0
        %792 = vmatpush2.bf16.msra.mxu0 0
        %793 = vmatprep.subr.bf16.mxu0 0
        %794 = vmatpush2.bf16.msra.mxu0 0
        %795 = vmatprep.subr.bf16.mxu0 0
        %796 = vmatpush2.bf16.msra.mxu0 0
        %797 = vmatprep.subr.bf16.mxu0 0
        %798 = vmatpush2.bf16.msra.mxu0 0
        %799 = vmatprep.subr.bf16.mxu0 0
        %800 = vmatpush2.bf16.msra.mxu0 0
        %801 = vmatprep.subr.bf16.mxu0 0
        %802 = vmatpush2.bf16.msra.mxu0 0
        %803 = vmatprep.subr.bf16.mxu0 0
        %804 = vmatpush2.bf16.msra.mxu0 0
        %805 = vmatprep.mubr.bf16.mxu0 0
        %806 = vmatmul.mubr.bf16.gmra.mxu0 %v543
        %v807 = vpop.f32.mrf.mxu0
        %v808 = vadd.f32 %v418, %v807
        %v809 = vpop.f32.mrf.mxu0
        %v810 = vadd.f32 %v422, %v809
        %v811 = vpop.f32.mrf.mxu0
        %v812 = vadd.f32 %v418, %v811
        %v813 = vpop.f32.mrf.mxu0
        %v814 = vadd.f32 %v422, %v813
        %815 = vmatprep.mubr.bf16.mxu0 0
        %816 = vmatmul.mubr.bf16.gmra.mxu0 %v546
        %v817 = vpop.f32.mrf.mxu0
        %v818 = vadd.f32 %v418, %v817
        %v819 = vpop.f32.mrf.mxu0
        %v820 = vadd.f32 %v422, %v819
        %v821 = vpop.f32.mrf.mxu0
        %v822 = vadd.f32 %v418, %v821
        %v823 = vpop.f32.mrf.mxu0
        %v824 = vadd.f32 %v422, %v823
        %825 = vmatprep.mubr.bf16.mxu0 0
        %826 = vmatmul.mubr.bf16.gmra.mxu0 %v549
        %v827 = vpop.f32.mrf.mxu0
        %v828 = vadd.f32 %v418, %v827
        %v829 = vpop.f32.mrf.mxu0
        %v830 = vadd.f32 %v422, %v829
        %v831 = vpop.f32.mrf.mxu0
        %v832 = vadd.f32 %v418, %v831
        %v833 = vpop.f32.mrf.mxu0
        %v834 = vadd.f32 %v422, %v833
        %835 = vmatprep.mubr.bf16.mxu0 0
        %836 = vmatmul.mubr.bf16.gmra.mxu0 %v552
        %v837 = vpop.f32.mrf.mxu0
        %v838 = vadd.f32 %v418, %v837
        %v839 = vpop.f32.mrf.mxu0
        %v840 = vadd.f32 %v422, %v839
        %v841 = vpop.f32.mrf.mxu0
        %v842 = vadd.f32 %v418, %v841
        %v843 = vpop.f32.mrf.mxu0
        %v844 = vadd.f32 %v422, %v843
        %845 = vdwg.mxu0
        %846 = vmatprep.subr.bf16.mxu0 0
        %847 = vmatpush1.bf16.msra.mxu0 0
        %848 = vmatprep.subr.bf16.mxu0 0
        %849 = vmatpush1.bf16.msra.mxu0 0
        %850 = vmatprep.subr.bf16.mxu0 0
        %851 = vmatpush1.bf16.msra.mxu0 0
        %852 = vmatprep.subr.bf16.mxu0 0
        %853 = vmatpush1.bf16.msra.mxu0 0
        %854 = vmatprep.subr.bf16.mxu0 0
        %855 = vmatpush1.bf16.msra.mxu0 0
        %856 = vmatprep.subr.bf16.mxu0 0
        %857 = vmatpush1.bf16.msra.mxu0 0
        %858 = vmatprep.subr.bf16.mxu0 %v520
        %859 = vmatpush1.bf16.msra.mxu0 %v519
        %860 = vmatprep.subr.bf16.mxu0 %v510
        %861 = vmatpush1.bf16.msra.mxu0 %v509
        %862 = vmatprep.subr.bf16.mxu0 0
        %863 = vmatpush2.bf16.msra.mxu0 0
        %864 = vmatprep.subr.bf16.mxu0 0
        %865 = vmatpush2.bf16.msra.mxu0 0
        %866 = vmatprep.subr.bf16.mxu0 0
        %867 = vmatpush2.bf16.msra.mxu0 0
        %868 = vmatprep.subr.bf16.mxu0 0
        %869 = vmatpush2.bf16.msra.mxu0 0
        %870 = vmatprep.subr.bf16.mxu0 0
        %871 = vmatpush2.bf16.msra.mxu0 0
        %872 = vmatprep.subr.bf16.mxu0 0
        %873 = vmatpush2.bf16.msra.mxu0 0
        %874 = vmatprep.subr.bf16.mxu0 0
        %875 = vmatpush2.bf16.msra.mxu0 0
        %876 = vmatprep.subr.bf16.mxu0 0
        %877 = vmatpush2.bf16.msra.mxu0 0
        %878 = vmatprep.mubr.bf16.mxu0 0
        %879 = vmatmul.mubr.bf16.gmra.mxu0 %v543
        %v880 = vpop.f32.mrf.mxu0
        %v881 = vadd.f32 %v426, %v880
        %v882 = vpop.f32.mrf.mxu0
        %v883 = vadd.f32 %v430, %v882
        %v884 = vpop.f32.mrf.mxu0
        %v885 = vadd.f32 %v426, %v884
        %v886 = vpop.f32.mrf.mxu0
        %v887 = vadd.f32 %v430, %v886
        %888 = vmatprep.mubr.bf16.mxu0 0
        %889 = vmatmul.mubr.bf16.gmra.mxu0 %v546
        %v890 = vpop.f32.mrf.mxu0
        %v891 = vadd.f32 %v426, %v890
        %v892 = vpop.f32.mrf.mxu0
        %v893 = vadd.f32 %v430, %v892
        %v894 = vpop.f32.mrf.mxu0
        %v895 = vadd.f32 %v426, %v894
        %v896 = vpop.f32.mrf.mxu0
        %v897 = vadd.f32 %v430, %v896
        %898 = vmatprep.mubr.bf16.mxu0 0
        %899 = vmatmul.mubr.bf16.gmra.mxu0 %v549
        %v900 = vpop.f32.mrf.mxu0
        %v901 = vadd.f32 %v426, %v900
        %v902 = vpop.f32.mrf.mxu0
        %v903 = vadd.f32 %v430, %v902
        %v904 = vpop.f32.mrf.mxu0
        %v905 = vadd.f32 %v426, %v904
        %v906 = vpop.f32.mrf.mxu0
        %v907 = vadd.f32 %v430, %v906
        %908 = vmatprep.mubr.bf16.mxu0 0
        %909 = vmatmul.mubr.bf16.gmra.mxu0 %v552
        %v910 = vpop.f32.mrf.mxu0
        %v911 = vadd.f32 %v426, %v910
        %v912 = vpop.f32.mrf.mxu0
        %v913 = vadd.f32 %v430, %v912
        %v914 = vpop.f32.mrf.mxu0
        %v915 = vadd.f32 %v426, %v914
        %v916 = vpop.f32.mrf.mxu0
        %v917 = vadd.f32 %v430, %v916
        %918 = vdwg.mxu0
        %v919 = vmul.f32 %v589, 0.5
        %v920 = vmul.f32 %v591, 0.5
        %v921 = vmul.f32 %v662, 0.5
        %v922 = vmul.f32 %v664, 0.5
        %v923 = vmul.f32 %v735, 0.5
        %v924 = vmul.f32 %v737, 0.5
        %v925 = vmul.f32 %v808, 0.5
        %v926 = vmul.f32 %v810, 0.5
        %v927 = vmul.f32 %v881, 0.5
        %v928 = vmul.f32 %v883, 0.5
        %v929 = vmul.f32 %v593, 0.5
        %v930 = vmul.f32 %v595, 0.5
        %v931 = vmul.f32 %v666, 0.5
        %v932 = vmul.f32 %v668, 0.5
        %v933 = vmul.f32 %v739, 0.5
        %v934 = vmul.f32 %v741, 0.5
        %v935 = vmul.f32 %v812, 0.5
        %v936 = vmul.f32 %v814, 0.5
        %v937 = vmul.f32 %v885, 0.5
        %v938 = vmul.f32 %v887, 0.5
        %v939 = vmul.f32 %v599, 0.5
        %v940 = vmul.f32 %v601, 0.5
        %v941 = vmul.f32 %v672, 0.5
        %v942 = vmul.f32 %v674, 0.5
        %v943 = vmul.f32 %v745, 0.5
        %v944 = vmul.f32 %v747, 0.5
        %v945 = vmul.f32 %v818, 0.5
        %v946 = vmul.f32 %v820, 0.5
        %v947 = vmul.f32 %v891, 0.5
        %v948 = vmul.f32 %v893, 0.5
        %v949 = vmul.f32 %v603, 0.5
        %v950 = vmul.f32 %v605, 0.5
        %v951 = vmul.f32 %v676, 0.5
        %v952 = vmul.f32 %v678, 0.5
        %v953 = vmul.f32 %v749, 0.5
        %v954 = vmul.f32 %v751, 0.5
        %v955 = vmul.f32 %v822, 0.5
        %v956 = vmul.f32 %v824, 0.5
        %v957 = vmul.f32 %v895, 0.5
        %v958 = vmul.f32 %v897, 0.5
        %v959 = vmul.f32 %v609, 0.5
        %v960 = vmul.f32 %v611, 0.5
        %v961 = vmul.f32 %v682, 0.5
        %v962 = vmul.f32 %v684, 0.5
        %v963 = vmul.f32 %v755, 0.5
        %v964 = vmul.f32 %v757, 0.5
        %v965 = vmul.f32 %v828, 0.5
        %v966 = vmul.f32 %v830, 0.5
        %v967 = vmul.f32 %v901, 0.5
        %v968 = vmul.f32 %v903, 0.5
        %v969 = vmul.f32 %v613, 0.5
        %v970 = vmul.f32 %v615, 0.5
        %v971 = vmul.f32 %v686, 0.5
        %v972 = vmul.f32 %v688, 0.5
        %v973 = vmul.f32 %v759, 0.5
        %v974 = vmul.f32 %v761, 0.5
        %v975 = vmul.f32 %v832, 0.5
        %v976 = vmul.f32 %v834, 0.5
        %v977 = vmul.f32 %v905, 0.5
        %v978 = vmul.f32 %v907, 0.5
        %v979 = vmul.f32 %v619, 0.5
        %v980 = vmul.f32 %v621, 0.5
        %v981 = vmul.f32 %v692, 0.5
        %v982 = vmul.f32 %v694, 0.5
        %v983 = vmul.f32 %v765, 0.5
        %v984 = vmul.f32 %v767, 0.5
        %v985 = vmul.f32 %v838, 0.5
        %v986 = vmul.f32 %v840, 0.5
        %v987 = vmul.f32 %v911, 0.5
        %v988 = vmul.f32 %v913, 0.5
        %v989 = vmul.f32 %v623, 0.5
        %v990 = vmul.f32 %v625, 0.5
        %v991 = vmul.f32 %v696, 0.5
        %v992 = vmul.f32 %v698, 0.5
        %v993 = vmul.f32 %v769, 0.5
        %v994 = vmul.f32 %v771, 0.5
        %v995 = vmul.f32 %v842, 0.5
        %v996 = vmul.f32 %v844, 0.5
        %v997 = vmul.f32 %v915, 0.5
        %v998 = vmul.f32 %v917, 0.5
        %v999 = vtanh.pop %v919
        %v1000 = vtanh.pop %v920
        %v1001 = vtanh.pop %v921
        %v1002 = vtanh.pop %v922
        %v1003 = vtanh.pop %v923
        %v1004 = vtanh.pop %v924
        %v1005 = vtanh.pop %v925
        %v1006 = vtanh.pop %v926
        %v1007 = vtanh.pop %v927
        %v1008 = vtanh.pop %v928
        %v1009 = vtanh.pop %v929
        %v1010 = vtanh.pop %v930
        %v1011 = vtanh.pop %v931
        %v1012 = vtanh.pop %v932
        %v1013 = vtanh.pop %v933
        %v1014 = vtanh.pop %v934
        %v1015 = vtanh.pop %v935
        %v1016 = vtanh.pop %v936
        %v1017 = vtanh.pop %v937
        %v1018 = vtanh.pop %v938
        %v1019 = vtanh.pop %v939
        %v1020 = vtanh.pop %v940
        %v1021 = vtanh.pop %v941
        %v1022 = vtanh.pop %v942
        %v1023 = vtanh.pop %v943
        %v1024 = vtanh.pop %v944
        %v1025 = vtanh.pop %v945
        %v1026 = vtanh.pop %v946
        %v1027 = vtanh.pop %v947
        %v1028 = vtanh.pop %v948
        %v1029 = vtanh.pop %v949
        %v1030 = vtanh.pop %v950
        %v1031 = vtanh.pop %v951
        %v1032 = vtanh.pop %v952
        %v1033 = vtanh.pop %v953
        %v1034 = vtanh.pop %v954
        %v1035 = vtanh.pop %v955
        %v1036 = vtanh.pop %v956
        %v1037 = vtanh.pop %v957
        %v1038 = vtanh.pop %v958
        %v1039 = vtanh.pop %v959
        %v1040 = vtanh.pop %v960
        %v1041 = vtanh.pop %v961
        %v1042 = vtanh.pop %v962
        %v1043 = vtanh.pop %v963
        %v1044 = vtanh.pop %v964
        %v1045 = vtanh.pop %v965
        %v1046 = vtanh.pop %v966
        %v1047 = vtanh.pop %v967
        %v1048 = vtanh.pop %v968
        %v1049 = vtanh.pop %v969
        %v1050 = vtanh.pop %v970
        %v1051 = vtanh.pop %v971
        %v1052 = vtanh.pop %v972
        %v1053 = vtanh.pop %v973
        %v1054 = vtanh.pop %v974
        %v1055 = vtanh.pop %v975
        %v1056 = vtanh.pop %v976
        %v1057 = vtanh.pop %v977
        %v1058 = vtanh.pop %v978
        %v1059 = vtanh.pop %v979
        %v1060 = vtanh.pop %v980
        %v1061 = vtanh.pop %v981
        %v1062 = vtanh.pop %v982
        %v1063 = vtanh.pop %v983
        %v1064 = vtanh.pop %v984
        %v1065 = vtanh.pop %v985
        %v1066 = vtanh.pop %v986
        %v1067 = vtanh.pop %v987
        %v1068 = vtanh.pop %v988
        %v1069 = vtanh.pop %v989
        %v1070 = vtanh.pop %v990
        %v1071 = vtanh.pop %v991
        %v1072 = vtanh.pop %v992
        %v1073 = vtanh.pop %v993
        %v1074 = vtanh.pop %v994
        %v1075 = vtanh.pop %v995
        %v1076 = vtanh.pop %v996
        %v1077 = vtanh.pop %v997
        %v1078 = vtanh.pop %v998
        %v1079 = vadd.f32 %v999, 1.0
        %v1080 = vadd.f32 %v1000, 1.0
        %v1081 = vadd.f32 %v1001, 1.0
        %v1082 = vadd.f32 %v1002, 1.0
        %v1083 = vadd.f32 %v1003, 1.0
        %v1084 = vadd.f32 %v1004, 1.0
        %v1085 = vadd.f32 %v1005, 1.0
        %v1086 = vadd.f32 %v1006, 1.0
        %v1087 = vadd.f32 %v1007, 1.0
        %v1088 = vadd.f32 %v1008, 1.0
        %v1089 = vadd.f32 %v1009, 1.0
        %v1090 = vadd.f32 %v1010, 1.0
        %v1091 = vadd.f32 %v1011, 1.0
        %v1092 = vadd.f32 %v1012, 1.0
        %v1093 = vadd.f32 %v1013, 1.0
        %v1094 = vadd.f32 %v1014, 1.0
        %v1095 = vadd.f32 %v1015, 1.0
        %v1096 = vadd.f32 %v1016, 1.0
        %v1097 = vadd.f32 %v1017, 1.0
        %v1098 = vadd.f32 %v1018, 1.0
        %v1099 = vadd.f32 %v1019, 1.0
        %v1100 = vadd.f32 %v1020, 1.0
        %v1101 = vadd.f32 %v1021, 1.0
        %v1102 = vadd.f32 %v1022, 1.0
        %v1103 = vadd.f32 %v1023, 1.0
        %v1104 = vadd.f32 %v1024, 1.0
        %v1105 = vadd.f32 %v1025, 1.0
        %v1106 = vadd.f32 %v1026, 1.0
        %v1107 = vadd.f32 %v1027, 1.0
        %v1108 = vadd.f32 %v1028, 1.0
        %v1109 = vadd.f32 %v1029, 1.0
        %v1110 = vadd.f32 %v1030, 1.0
        %v1111 = vadd.f32 %v1031, 1.0
        %v1112 = vadd.f32 %v1032, 1.0
        %v1113 = vadd.f32 %v1033, 1.0
        %v1114 = vadd.f32 %v1034, 1.0
        %v1115 = vadd.f32 %v1035, 1.0
        %v1116 = vadd.f32 %v1036, 1.0
        %v1117 = vadd.f32 %v1037, 1.0
        %v1118 = vadd.f32 %v1038, 1.0
        %v1119 = vadd.f32 %v1039, 1.0
        %v1120 = vadd.f32 %v1040, 1.0
        %v1121 = vadd.f32 %v1041, 1.0
        %v1122 = vadd.f32 %v1042, 1.0
        %v1123 = vadd.f32 %v1043, 1.0
        %v1124 = vadd.f32 %v1044, 1.0
        %v1125 = vadd.f32 %v1045, 1.0
        %v1126 = vadd.f32 %v1046, 1.0
        %v1127 = vadd.f32 %v1047, 1.0
        %v1128 = vadd.f32 %v1048, 1.0
        %v1129 = vadd.f32 %v1049, 1.0
        %v1130 = vadd.f32 %v1050, 1.0
        %v1131 = vadd.f32 %v1051, 1.0
        %v1132 = vadd.f32 %v1052, 1.0
        %v1133 = vadd.f32 %v1053, 1.0
        %v1134 = vadd.f32 %v1054, 1.0
        %v1135 = vadd.f32 %v1055, 1.0
        %v1136 = vadd.f32 %v1056, 1.0
        %v1137 = vadd.f32 %v1057, 1.0
        %v1138 = vadd.f32 %v1058, 1.0
        %v1139 = vadd.f32 %v1059, 1.0
        %v1140 = vadd.f32 %v1060, 1.0
        %v1141 = vadd.f32 %v1061, 1.0
        %v1142 = vadd.f32 %v1062, 1.0
        %v1143 = vadd.f32 %v1063, 1.0
        %v1144 = vadd.f32 %v1064, 1.0
        %v1145 = vadd.f32 %v1065, 1.0
        %v1146 = vadd.f32 %v1066, 1.0
        %v1147 = vadd.f32 %v1067, 1.0
        %v1148 = vadd.f32 %v1068, 1.0
        %v1149 = vadd.f32 %v1069, 1.0
        %v1150 = vadd.f32 %v1070, 1.0
        %v1151 = vadd.f32 %v1071, 1.0
        %v1152 = vadd.f32 %v1072, 1.0
        %v1153 = vadd.f32 %v1073, 1.0
        %v1154 = vadd.f32 %v1074, 1.0
        %v1155 = vadd.f32 %v1075, 1.0
        %v1156 = vadd.f32 %v1076, 1.0
        %v1157 = vadd.f32 %v1077, 1.0
        %v1158 = vadd.f32 %v1078, 1.0
        %v1159 = vmul.f32 %v1079, 0.5
        %v1160 = vmul.f32 %v1080, 0.5
        %v1161 = vmul.f32 %v1081, 0.5
        %v1162 = vmul.f32 %v1082, 0.5
        %v1163 = vmul.f32 %v1083, 0.5
        %v1164 = vmul.f32 %v1084, 0.5
        %v1165 = vmul.f32 %v1085, 0.5
        %v1166 = vmul.f32 %v1086, 0.5
        %v1167 = vmul.f32 %v1087, 0.5
        %v1168 = vmul.f32 %v1088, 0.5
        %v1169 = vmul.f32 %v1089, 0.5
        %v1170 = vmul.f32 %v1090, 0.5
        %v1171 = vmul.f32 %v1091, 0.5
        %v1172 = vmul.f32 %v1092, 0.5
        %v1173 = vmul.f32 %v1093, 0.5
        %v1174 = vmul.f32 %v1094, 0.5
        %v1175 = vmul.f32 %v1095, 0.5
        %v1176 = vmul.f32 %v1096, 0.5
        %v1177 = vmul.f32 %v1097, 0.5
        %v1178 = vmul.f32 %v1098, 0.5
        %v1179 = vmul.f32 %v1099, 0.5
        %v1180 = vmul.f32 %v1100, 0.5
        %v1181 = vmul.f32 %v1101, 0.5
        %v1182 = vmul.f32 %v1102, 0.5
        %v1183 = vmul.f32 %v1103, 0.5
        %v1184 = vmul.f32 %v1104, 0.5
        %v1185 = vmul.f32 %v1105, 0.5
        %v1186 = vmul.f32 %v1106, 0.5
        %v1187 = vmul.f32 %v1107, 0.5
        %v1188 = vmul.f32 %v1108, 0.5
        %v1189 = vmul.f32 %v1109, 0.5
        %v1190 = vmul.f32 %v1110, 0.5
        %v1191 = vmul.f32 %v1111, 0.5
        %v1192 = vmul.f32 %v1112, 0.5
        %v1193 = vmul.f32 %v1113, 0.5
        %v1194 = vmul.f32 %v1114, 0.5
        %v1195 = vmul.f32 %v1115, 0.5
        %v1196 = vmul.f32 %v1116, 0.5
        %v1197 = vmul.f32 %v1117, 0.5
        %v1198 = vmul.f32 %v1118, 0.5
        %v1199 = vmul.f32 %v1119, 0.5
        %v1200 = vmul.f32 %v1120, 0.5
        %v1201 = vmul.f32 %v1121, 0.5
        %v1202 = vmul.f32 %v1122, 0.5
        %v1203 = vmul.f32 %v1123, 0.5
        %v1204 = vmul.f32 %v1124, 0.5
        %v1205 = vmul.f32 %v1125, 0.5
        %v1206 = vmul.f32 %v1126, 0.5
        %v1207 = vmul.f32 %v1127, 0.5
        %v1208 = vmul.f32 %v1128, 0.5
        %v1209 = vmul.f32 %v1129, 0.5
        %v1210 = vmul.f32 %v1130, 0.5
        %v1211 = vmul.f32 %v1131, 0.5
        %v1212 = vmul.f32 %v1132, 0.5
        %v1213 = vmul.f32 %v1133, 0.5
        %v1214 = vmul.f32 %v1134, 0.5
        %v1215 = vmul.f32 %v1135, 0.5
        %v1216 = vmul.f32 %v1136, 0.5
        %v1217 = vmul.f32 %v1137, 0.5
        %v1218 = vmul.f32 %v1138, 0.5
        %v1219 = vmul.f32 %v1139, 0.5
        %v1220 = vmul.f32 %v1140, 0.5
        %v1221 = vmul.f32 %v1141, 0.5
        %v1222 = vmul.f32 %v1142, 0.5
        %v1223 = vmul.f32 %v1143, 0.5
        %v1224 = vmul.f32 %v1144, 0.5
        %v1225 = vmul.f32 %v1145, 0.5
        %v1226 = vmul.f32 %v1146, 0.5
        %v1227 = vmul.f32 %v1147, 0.5
        %v1228 = vmul.f32 %v1148, 0.5
        %v1229 = vmul.f32 %v1149, 0.5
        %v1230 = vmul.f32 %v1150, 0.5
        %v1231 = vmul.f32 %v1151, 0.5
        %v1232 = vmul.f32 %v1152, 0.5
        %v1233 = vmul.f32 %v1153, 0.5
        %v1234 = vmul.f32 %v1154, 0.5
        %v1235 = vmul.f32 %v1155, 0.5
        %v1236 = vmul.f32 %v1156, 0.5
        %v1237 = vmul.f32 %v1157, 0.5
        %v1238 = vmul.f32 %v1158, 0.5
        %v1239 = vmul.f32 %v589, %v1159
        %v1240 = vmul.f32 %v591, %v1160
        %v1241 = vmul.f32 %v662, %v1161
        %v1242 = vmul.f32 %v664, %v1162
        %v1243 = vmul.f32 %v735, %v1163
        %v1244 = vmul.f32 %v737, %v1164
        %v1245 = vmul.f32 %v808, %v1165
        %v1246 = vmul.f32 %v810, %v1166
        %v1247 = vmul.f32 %v881, %v1167
        %v1248 = vmul.f32 %v883, %v1168
        %v1249 = vmul.f32 %v593, %v1169
        %v1250 = vmul.f32 %v595, %v1170
        %v1251 = vmul.f32 %v666, %v1171
        %v1252 = vmul.f32 %v668, %v1172
        %v1253 = vmul.f32 %v739, %v1173
        %v1254 = vmul.f32 %v741, %v1174
        %v1255 = vmul.f32 %v812, %v1175
        %v1256 = vmul.f32 %v814, %v1176
        %v1257 = vmul.f32 %v885, %v1177
        %v1258 = vmul.f32 %v887, %v1178
        %v1259 = vmul.f32 %v599, %v1179
        %v1260 = vmul.f32 %v601, %v1180
        %v1261 = vmul.f32 %v672, %v1181
        %v1262 = vmul.f32 %v674, %v1182
        %v1263 = vmul.f32 %v745, %v1183
        %v1264 = vmul.f32 %v747, %v1184
        %v1265 = vmul.f32 %v818, %v1185
        %v1266 = vmul.f32 %v820, %v1186
        %v1267 = vmul.f32 %v891, %v1187
        %v1268 = vmul.f32 %v893, %v1188
        %v1269 = vmul.f32 %v603, %v1189
        %v1270 = vmul.f32 %v605, %v1190
        %v1271 = vmul.f32 %v676, %v1191
        %v1272 = vmul.f32 %v678, %v1192
        %v1273 = vmul.f32 %v749, %v1193
        %v1274 = vmul.f32 %v751, %v1194
        %v1275 = vmul.f32 %v822, %v1195
        %v1276 = vmul.f32 %v824, %v1196
        %v1277 = vmul.f32 %v895, %v1197
        %v1278 = vmul.f32 %v897, %v1198
        %v1279 = vmul.f32 %v609, %v1199
        %v1280 = vmul.f32 %v611, %v1200
        %v1281 = vmul.f32 %v682, %v1201
        %v1282 = vmul.f32 %v684, %v1202
        %v1283 = vmul.f32 %v755, %v1203
        %v1284 = vmul.f32 %v757, %v1204
        %v1285 = vmul.f32 %v828, %v1205
        %v1286 = vmul.f32 %v830, %v1206
        %v1287 = vmul.f32 %v901, %v1207
        %v1288 = vmul.f32 %v903, %v1208
        %v1289 = vmul.f32 %v613, %v1209
        %v1290 = vmul.f32 %v615, %v1210
        %v1291 = vmul.f32 %v686, %v1211
        %v1292 = vmul.f32 %v688, %v1212
        %v1293 = vmul.f32 %v759, %v1213
        %v1294 = vmul.f32 %v761, %v1214
        %v1295 = vmul.f32 %v832, %v1215
        %v1296 = vmul.f32 %v834, %v1216
        %v1297 = vmul.f32 %v905, %v1217
        %v1298 = vmul.f32 %v907, %v1218
        %v1299 = vmul.f32 %v619, %v1219
        %v1300 = vmul.f32 %v621, %v1220
        %v1301 = vmul.f32 %v692, %v1221
        %v1302 = vmul.f32 %v694, %v1222
        %v1303 = vmul.f32 %v765, %v1223
        %v1304 = vmul.f32 %v767, %v1224
        %v1305 = vmul.f32 %v838, %v1225
        %v1306 = vmul.f32 %v840, %v1226
        %v1307 = vmul.f32 %v911, %v1227
        %v1308 = vmul.f32 %v913, %v1228
        %v1309 = vmul.f32 %v623, %v1229
        %v1310 = vmul.f32 %v625, %v1230
        %v1311 = vmul.f32 %v696, %v1231
        %v1312 = vmul.f32 %v698, %v1232
        %v1313 = vmul.f32 %v769, %v1233
        %v1314 = vmul.f32 %v771, %v1234
        %v1315 = vmul.f32 %v842, %v1235
        %v1316 = vmul.f32 %v844, %v1236
        %v1317 = vmul.f32 %v915, %v1237
        %v1318 = vmul.f32 %v917, %v1238
        %v1319 = vld [vmem:[#allocation2] sm:$0xff]
        %v1320 = vld [vmem:[#allocation2 + $0x8] sm:$0xff]
        %v1321 = vld [vmem:[#allocation2 + $0x10] sm:$0xff]
        %v1322 = vld [vmem:[#allocation2 + $0x18] sm:$0xff]
        %v1323 = vld [vmem:[#allocation2 + $0x20] sm:$0xff]
        %v1324 = vld [vmem:[#allocation2 + $0x28] sm:$0xff]
        %v1325 = vld [vmem:[#allocation2 + $0x30] sm:$0xff]
        %v1326 = vld [vmem:[#allocation2 + $0x38] sm:$0xff]
        %v1327 = vld [vmem:[#allocation2 + $0x40] sm:$0xff]
        %v1328 = vld [vmem:[#allocation2 + $0x48] sm:$0xff]
        %v1329 = vadd.f32 %v1239, %v1249
        %v1330 = vadd.f32 %v1329, %v1259
        %v1331 = vadd.f32 %v1330, %v1269
        %v1332 = vadd.f32 %v1331, %v1279
        %v1333 = vadd.f32 %v1332, %v1289
        %v1334 = vadd.f32 %v1333, %v1299
        %v1335 = vadd.f32 %v1334, %v1309
        %v1336 = vadd.f32 %v1240, %v1250
        %v1337 = vadd.f32 %v1336, %v1260
        %v1338 = vadd.f32 %v1337, %v1270
        %v1339 = vadd.f32 %v1338, %v1280
        %v1340 = vadd.f32 %v1339, %v1290
        %v1341 = vadd.f32 %v1340, %v1300
        %v1342 = vadd.f32 %v1341, %v1310
        %v1343 = vadd.f32 %v1241, %v1251
        %v1344 = vadd.f32 %v1343, %v1261
        %v1345 = vadd.f32 %v1344, %v1271
        %v1346 = vadd.f32 %v1345, %v1281
        %v1347 = vadd.f32 %v1346, %v1291
        %v1348 = vadd.f32 %v1347, %v1301
        %v1349 = vadd.f32 %v1348, %v1311
        %v1350 = vadd.f32 %v1242, %v1252
        %v1351 = vadd.f32 %v1350, %v1262
        %v1352 = vadd.f32 %v1351, %v1272
        %v1353 = vadd.f32 %v1352, %v1282
        %v1354 = vadd.f32 %v1353, %v1292
        %v1355 = vadd.f32 %v1354, %v1302
        %v1356 = vadd.f32 %v1355, %v1312
        %v1357 = vadd.f32 %v1243, %v1253
        %v1358 = vadd.f32 %v1357, %v1263
        %v1359 = vadd.f32 %v1358, %v1273
        %v1360 = vadd.f32 %v1359, %v1283
        %v1361 = vadd.f32 %v1360, %v1293
        %v1362 = vadd.f32 %v1361, %v1303
        %v1363 = vadd.f32 %v1362, %v1313
        %v1364 = vadd.f32 %v1244, %v1254
        %v1365 = vadd.f32 %v1364, %v1264
        %v1366 = vadd.f32 %v1365, %v1274
        %v1367 = vadd.f32 %v1366, %v1284
        %v1368 = vadd.f32 %v1367, %v1294
        %v1369 = vadd.f32 %v1368, %v1304
        %v1370 = vadd.f32 %v1369, %v1314
        %v1371 = vadd.f32 %v1245, %v1255
        %v1372 = vadd.f32 %v1371, %v1265
        %v1373 = vadd.f32 %v1372, %v1275
        %v1374 = vadd.f32 %v1373, %v1285
        %v1375 = vadd.f32 %v1374, %v1295
        %v1376 = vadd.f32 %v1375, %v1305
        %v1377 = vadd.f32 %v1376, %v1315
        %v1378 = vadd.f32 %v1246, %v1256
        %v1379 = vadd.f32 %v1378, %v1266
        %v1380 = vadd.f32 %v1379, %v1276
        %v1381 = vadd.f32 %v1380, %v1286
        %v1382 = vadd.f32 %v1381, %v1296
        %v1383 = vadd.f32 %v1382, %v1306
        %v1384 = vadd.f32 %v1383, %v1316
        %v1385 = vadd.f32 %v1247, %v1257
        %v1386 = vadd.f32 %v1385, %v1267
        %v1387 = vadd.f32 %v1386, %v1277
        %v1388 = vadd.f32 %v1387, %v1287
        %v1389 = vadd.f32 %v1388, %v1297
        %v1390 = vadd.f32 %v1389, %v1307
        %v1391 = vadd.f32 %v1390, %v1317
        %v1392 = vadd.f32 %v1248, %v1258
        %v1393 = vadd.f32 %v1392, %v1268
        %v1394 = vadd.f32 %v1393, %v1278
        %v1395 = vadd.f32 %v1394, %v1288
        %v1396 = vadd.f32 %v1395, %v1298
        %v1397 = vadd.f32 %v1396, %v1308
        %v1398 = vadd.f32 %v1397, %v1318
        %v1399 = vadd.f32 %v1319, %v1335
        %v1400 = vadd.f32 %v1320, %v1342
        %v1401 = vadd.f32 %v1321, %v1349
        %v1402 = vadd.f32 %v1322, %v1356
        %v1403 = vadd.f32 %v1323, %v1363
        %v1404 = vadd.f32 %v1324, %v1370
        %v1405 = vadd.f32 %v1325, %v1377
        %v1406 = vadd.f32 %v1326, %v1384
        %v1407 = vadd.f32 %v1327, %v1391
        %v1408 = vadd.f32 %v1328, %v1398
        %1409 = vst [vmem:[#allocation2] sm:$0xff] %v1399
        %1410 = vst [vmem:[#allocation2 + $0x8] sm:$0xff] %v1400
        %1411 = vst [vmem:[#allocation2 + $0x10] sm:$0xff] %v1401
        %1412 = vst [vmem:[#allocation2 + $0x18] sm:$0xff] %v1402
        %1413 = vst [vmem:[#allocation2 + $0x20] sm:$0xff] %v1403
        %1414 = vst [vmem:[#allocation2 + $0x28] sm:$0xff] %v1404
        %1415 = vst [vmem:[#allocation2 + $0x30] sm:$0xff] %v1405
        %1416 = vst [vmem:[#allocation2 + $0x38] sm:$0xff] %v1406
        %1417 = vst [vmem:[#allocation2 + $0x40] sm:$0xff] %v1407
        %1418 = vst [vmem:[#allocation2 + $0x48] sm:$0xff] %v1408
        // Predicated region
        $region49: #{forward.1} parent=43 // pred_check
          %p1419 = pneg %p278
        $region50: #{forward.1} parent=43 // pred_check_branch
          %1421 = sbr.rel (%p1419) target = $region52
        $region51: #{forward.1} parent=43 // pred_region
          %vm1422 = vcmp.gt.f32.partialorder -1.0, 0.0
          %v1423 = vsel %vm1422, 1, 0
          %v1424 = vcvt.s32.f32 %v1423
          %v1425 = vpack.c.bf16 %v1424, %v1424
          %v1426 = vld [vmem:[%s4] sm:$0xf]
          %v1427 = vld [vmem:[%s4 + $0x4] sm:$0xf]
          %v1428 = vld [vmem:[%s4 + $0x8] sm:$0xf]
          %v1429 = vld [vmem:[%s4 + $0xc] sm:$0xf]
          %v1430 = vld [vmem:[%s4 + $0x10] sm:$0xf]
          %v1431 = vld [vmem:[%s4 + $0x14] sm:$0xf]
          %v1432 = vld [vmem:[%s4 + $0x18] sm:$0xf]
          %v1433 = vld [vmem:[%s4 + $0x1c] sm:$0xf]
          %v1434 = vld [vmem:[%s4 + $0x20] sm:$0xf]
          %v1435 = vld [vmem:[%s4 + $0x24] sm:$0xf]
          %v1436 = vld [vmem:[%s4 + $0x28] sm:$0xf]
          %v1437 = vld [vmem:[%s4 + $0x2c] sm:$0xf]
          %v1438 = vld [vmem:[%s4 + $0x30] sm:$0xf]
          %v1439 = vld [vmem:[%s4 + $0x34] sm:$0xf]
          %v1440 = vld [vmem:[%s4 + $0x38] sm:$0xf]
          %v1441 = vld [vmem:[%s4 + $0x3c] sm:$0xf]
          %v1442 = vld [vmem:[%s4 + $0x40] sm:$0xf]
          %v1443 = vld [vmem:[%s4 + $0x44] sm:$0xf]
          %v1444 = vld [vmem:[%s4 + $0x48] sm:$0xf]
          %v1445 = vld [vmem:[%s4 + $0x4c] sm:$0xf]
          %v1446 = vld [vmem:[%s4 + $0x50] sm:$0xf]
          %v1447 = vld [vmem:[%s4 + $0x54] sm:$0xf]
          %v1448 = vld [vmem:[%s4 + $0x58] sm:$0xf]
          %v1449 = vld [vmem:[%s4 + $0x5c] sm:$0xf]
          %v1450 = vld [vmem:[%s4 + $0x60] sm:$0xf]
          %v1451 = vld [vmem:[%s4 + $0x64] sm:$0xf]
          %v1452 = vld [vmem:[%s4 + $0x68] sm:$0xf]
          %v1453 = vld [vmem:[%s4 + $0x6c] sm:$0xf]
          %v1454 = vld [vmem:[%s4 + $0x70] sm:$0xf]
          %v1455 = vld [vmem:[%s4 + $0x74] sm:$0xf]
          %v1456 = vld [vmem:[%s4 + $0x78] sm:$0xf]
          %v1457 = vld [vmem:[%s4 + $0x7c] sm:$0xf]
          %v1458 = vld [vmem:[%s4 + $0x80] sm:$0xf]
          %v1459 = vld [vmem:[%s4 + $0x84] sm:$0xf]
          %v1460 = vld [vmem:[%s4 + $0x88] sm:$0xf]
          %v1461 = vld [vmem:[%s4 + $0x8c] sm:$0xf]
          %v1462 = vld [vmem:[%s4 + $0x90] sm:$0xf]
          %v1463 = vld [vmem:[%s4 + $0x94] sm:$0xf]
          %v1464 = vld [vmem:[%s4 + $0x98] sm:$0xf]
          %v1465 = vld [vmem:[%s4 + $0x9c] sm:$0xf]
          %v1466 = vld [vmem:[%s4 + $0xa0] sm:$0xf]
          %v1467 = vld [vmem:[%s4 + $0xa4] sm:$0xf]
          %v1468 = vld [vmem:[%s4 + $0xa8] sm:$0xf]
          %v1469 = vld [vmem:[%s4 + $0xac] sm:$0xf]
          %v1470 = vld [vmem:[%s4 + $0xb0] sm:$0xf]
          %v1471 = vld [vmem:[%s4 + $0xb4] sm:$0xf]
          %v1472 = vld [vmem:[%s4 + $0xb8] sm:$0xf]
          %v1473 = vld [vmem:[%s4 + $0xbc] sm:$0xf]
          %v1474 = vld [vmem:[%s4 + $0xc0] sm:$0xf]
          %v1475 = vld [vmem:[%s4 + $0xc4] sm:$0xf]
          %v1476 = vld [vmem:[%s4 + $0xc8] sm:$0xf]
          %v1477 = vld [vmem:[%s4 + $0xcc] sm:$0xf]
          %v1478 = vld [vmem:[%s4 + $0xd0] sm:$0xf]
          %v1479 = vld [vmem:[%s4 + $0xd4] sm:$0xf]
          %v1480 = vld [vmem:[%s4 + $0xd8] sm:$0xf]
          %v1481 = vld [vmem:[%s4 + $0xdc] sm:$0xf]
          %v1482 = vld [vmem:[%s4 + $0xe0] sm:$0xf]
          %v1483 = vld [vmem:[%s4 + $0xe4] sm:$0xf]
          %v1484 = vld [vmem:[%s4 + $0xe8] sm:$0xf]
          %v1485 = vld [vmem:[%s4 + $0xec] sm:$0xf]
          %v1486 = vld [vmem:[%s4 + $0xf0] sm:$0xf]
          %v1487 = vld [vmem:[%s4 + $0xf4] sm:$0xf]
          %v1488 = vld [vmem:[%s4 + $0xf8] sm:$0xf]
          %v1489 = vld [vmem:[%s4 + $0xfc] sm:$0xf]
          %v1490 = vld [vmem:[%s4 + $0x100] sm:$0xf]
          %v1491 = vld [vmem:[%s4 + $0x104] sm:$0xf]
          %v1492 = vld [vmem:[%s4 + $0x108] sm:$0xf]
          %v1493 = vld [vmem:[%s4 + $0x10c] sm:$0xf]
          %v1494 = vld [vmem:[%s4 + $0x110] sm:$0xf]
          %v1495 = vld [vmem:[%s4 + $0x114] sm:$0xf]
          %v1496 = vld [vmem:[%s4 + $0x118] sm:$0xf]
          %v1497 = vld [vmem:[%s4 + $0x11c] sm:$0xf]
          %v1498 = vld [vmem:[%s4 + $0x120] sm:$0xf]
          %v1499 = vld [vmem:[%s4 + $0x124] sm:$0xf]
          %v1500 = vld [vmem:[%s4 + $0x128] sm:$0xf]
          %v1501 = vld [vmem:[%s4 + $0x12c] sm:$0xf]
          %v1502 = vld [vmem:[%s4 + $0x130] sm:$0xf]
          %v1503 = vld [vmem:[%s4 + $0x134] sm:$0xf]
          %v1504 = vld [vmem:[%s4 + $0x138] sm:$0xf]
          %v1505 = vld [vmem:[%s4 + $0x13c] sm:$0xf]
          %v1506 = vld [vmem:[%s4 + $0x140] sm:$0xf]
          %v1507 = vld [vmem:[%s4 + $0x144] sm:$0xf]
          %v1508 = vld [vmem:[%s4 + $0x148] sm:$0xf]
          %v1509 = vld [vmem:[%s4 + $0x14c] sm:$0xf]
          %v1510 = vld [vmem:[%s4 + $0x150] sm:$0xf]
          %v1511 = vld [vmem:[%s4 + $0x154] sm:$0xf]
          %v1512 = vld [vmem:[%s4 + $0x158] sm:$0xf]
          %v1513 = vld [vmem:[%s4 + $0x15c] sm:$0xf]
          %v1514 = vld [vmem:[%s4 + $0x160] sm:$0xf]
          %v1515 = vld [vmem:[%s4 + $0x164] sm:$0xf]
          %v1516 = vld [vmem:[%s4 + $0x168] sm:$0xf]
          %v1517 = vld [vmem:[%s4 + $0x16c] sm:$0xf]
          %v1518 = vld [vmem:[%s4 + $0x170] sm:$0xf]
          %v1519 = vld [vmem:[%s4 + $0x174] sm:$0xf]
          %v1520 = vld [vmem:[%s4 + $0x178] sm:$0xf]
          %v1521 = vld [vmem:[%s4 + $0x17c] sm:$0xf]
          %v1522 = vld [vmem:[%s4 + $0x180] sm:$0xf]
          %v1523 = vld [vmem:[%s4 + $0x184] sm:$0xf]
          %v1524 = vld [vmem:[%s4 + $0x188] sm:$0xf]
          %v1525 = vld [vmem:[%s4 + $0x18c] sm:$0xf]
          %v1526 = vld [vmem:[%s4 + $0x190] sm:$0xf]
          %v1527 = vld [vmem:[%s4 + $0x194] sm:$0xf]
          %v1528 = vld [vmem:[%s4 + $0x198] sm:$0xf]
          %v1529 = vld [vmem:[%s4 + $0x19c] sm:$0xf]
          %v1530 = vld [vmem:[%s4 + $0x1a0] sm:$0xf]
          %v1531 = vld [vmem:[%s4 + $0x1a4] sm:$0xf]
          %v1532 = vld [vmem:[%s4 + $0x1a8] sm:$0xf]
          %v1533 = vld [vmem:[%s4 + $0x1ac] sm:$0xf]
          %v1534 = vld [vmem:[%s4 + $0x1b0] sm:$0xf]
          %v1535 = vld [vmem:[%s4 + $0x1b4] sm:$0xf]
          %v1536 = vld [vmem:[%s4 + $0x1b8] sm:$0xf]
          %v1537 = vld [vmem:[%s4 + $0x1bc] sm:$0xf]
          %v1538 = vld [vmem:[%s4 + $0x1c0] sm:$0xf]
          %v1539 = vld [vmem:[%s4 + $0x1c4] sm:$0xf]
          %v1540 = vld [vmem:[%s4 + $0x1c8] sm:$0xf]
          %v1541 = vld [vmem:[%s4 + $0x1cc] sm:$0xf]
          %v1542 = vld [vmem:[%s4 + $0x1d0] sm:$0xf]
          %v1543 = vld [vmem:[%s4 + $0x1d4] sm:$0xf]
          %v1544 = vld [vmem:[%s4 + $0x1d8] sm:$0xf]
          %v1545 = vld [vmem:[%s4 + $0x1dc] sm:$0xf]
          %v1546 = vld [vmem:[%s4 + $0x1e0] sm:$0xf]
          %v1547 = vld [vmem:[%s4 + $0x1e4] sm:$0xf]
          %v1548 = vld [vmem:[%s4 + $0x1e8] sm:$0xf]
          %v1549 = vld [vmem:[%s4 + $0x1ec] sm:$0xf]
          %v1550 = vld [vmem:[%s4 + $0x1f0] sm:$0xf]
          %v1551 = vld [vmem:[%s4 + $0x1f4] sm:$0xf]
          %v1552 = vld [vmem:[%s4 + $0x1f8] sm:$0xf]
          %v1553 = vld [vmem:[%s4 + $0x1fc] sm:$0xf]
          %v1554 = vld [vmem:[%s4 + $0x200] sm:$0xf]
          %v1555 = vld [vmem:[%s4 + $0x204] sm:$0xf]
          %v1556 = vld [vmem:[%s4 + $0x208] sm:$0xf]
          %v1557 = vld [vmem:[%s4 + $0x20c] sm:$0xf]
          %v1558 = vld [vmem:[%s4 + $0x210] sm:$0xf]
          %v1559 = vld [vmem:[%s4 + $0x214] sm:$0xf]
          %v1560 = vld [vmem:[%s4 + $0x218] sm:$0xf]
          %v1561 = vld [vmem:[%s4 + $0x21c] sm:$0xf]
          %v1562 = vld [vmem:[%s4 + $0x220] sm:$0xf]
          %v1563 = vld [vmem:[%s4 + $0x224] sm:$0xf]
          %v1564 = vld [vmem:[%s4 + $0x228] sm:$0xf]
          %v1565 = vld [vmem:[%s4 + $0x22c] sm:$0xf]
          %v1566 = vld [vmem:[%s4 + $0x230] sm:$0xf]
          %v1567 = vld [vmem:[%s4 + $0x234] sm:$0xf]
          %v1568 = vld [vmem:[%s4 + $0x238] sm:$0xf]
          %v1569 = vld [vmem:[%s4 + $0x23c] sm:$0xf]
          %v1570 = vld [vmem:[%s4 + $0x240] sm:$0xf]
          %v1571 = vld [vmem:[%s4 + $0x244] sm:$0xf]
          %v1572 = vld [vmem:[%s4 + $0x248] sm:$0xf]
          %v1573 = vld [vmem:[%s4 + $0x24c] sm:$0xf]
          %v1574 = vld [vmem:[%s4 + $0x250] sm:$0xf]
          %v1575 = vld [vmem:[%s4 + $0x254] sm:$0xf]
          %v1576 = vld [vmem:[%s4 + $0x258] sm:$0xf]
          %v1577 = vld [vmem:[%s4 + $0x25c] sm:$0xf]
          %v1578 = vld [vmem:[%s4 + $0x260] sm:$0xf]
          %v1579 = vld [vmem:[%s4 + $0x264] sm:$0xf]
          %v1580 = vld [vmem:[%s4 + $0x268] sm:$0xf]
          %v1581 = vld [vmem:[%s4 + $0x26c] sm:$0xf]
          %v1582 = vld [vmem:[%s4 + $0x270] sm:$0xf]
          %v1583 = vld [vmem:[%s4 + $0x274] sm:$0xf]
          %v1584 = vld [vmem:[%s4 + $0x278] sm:$0xf]
          %v1585 = vld [vmem:[%s4 + $0x27c] sm:$0xf]
          %v1586 = vld [vmem:[%s5] sm:$0x1]
          %v1747 = vunpack.c.l.b16 %v1426
          %v1748 = vunpack.c.l.b16 %v1427
          %v1749 = vunpack.c.l.b16 %v1428
          %v1750 = vunpack.c.l.b16 %v1429
          %v1751 = vunpack.c.l.b16 %v1430
          %v1752 = vunpack.c.l.b16 %v1431
          %v1753 = vunpack.c.l.b16 %v1432
          %v1754 = vunpack.c.l.b16 %v1433
          %v1755 = vunpack.c.l.b16 %v1434
          %v1756 = vunpack.c.l.b16 %v1435
          %v1757 = vunpack.c.l.b16 %v1436
          %v1758 = vunpack.c.l.b16 %v1437
          %v1759 = vunpack.c.l.b16 %v1438
          %v1760 = vunpack.c.l.b16 %v1439
          %v1761 = vunpack.c.l.b16 %v1440
          %v1762 = vunpack.c.l.b16 %v1441
          %v1763 = vunpack.c.l.b16 %v1442
          %v1764 = vunpack.c.l.b16 %v1443
          %v1765 = vunpack.c.l.b16 %v1444
          %v1766 = vunpack.c.l.b16 %v1445
          %v1767 = vunpack.c.l.b16 %v1446
          %v1768 = vunpack.c.l.b16 %v1447
          %v1769 = vunpack.c.l.b16 %v1448
          %v1770 = vunpack.c.l.b16 %v1449
          %v1771 = vunpack.c.l.b16 %v1450
          %v1772 = vunpack.c.l.b16 %v1451
          %v1773 = vunpack.c.l.b16 %v1452
          %v1774 = vunpack.c.l.b16 %v1453
          %v1775 = vunpack.c.l.b16 %v1454
          %v1776 = vunpack.c.l.b16 %v1455
          %v1777 = vunpack.c.l.b16 %v1456
          %v1778 = vunpack.c.l.b16 %v1457
          %v1779 = vunpack.c.l.b16 %v1458
          %v1780 = vunpack.c.l.b16 %v1459
          %v1781 = vunpack.c.l.b16 %v1460
          %v1782 = vunpack.c.l.b16 %v1461
          %v1783 = vunpack.c.l.b16 %v1462
          %v1784 = vunpack.c.l.b16 %v1463
          %v1785 = vunpack.c.l.b16 %v1464
          %v1786 = vunpack.c.l.b16 %v1465
          %v1787 = vunpack.c.l.b16 %v1466
          %v1788 = vunpack.c.l.b16 %v1467
          %v1789 = vunpack.c.l.b16 %v1468
          %v1790 = vunpack.c.l.b16 %v1469
          %v1791 = vunpack.c.l.b16 %v1470
          %v1792 = vunpack.c.l.b16 %v1471
          %v1793 = vunpack.c.l.b16 %v1472
          %v1794 = vunpack.c.l.b16 %v1473
          %v1795 = vunpack.c.l.b16 %v1474
          %v1796 = vunpack.c.l.b16 %v1475
          %v1797 = vunpack.c.l.b16 %v1476
          %v1798 = vunpack.c.l.b16 %v1477
          %v1799 = vunpack.c.l.b16 %v1478
          %v1800 = vunpack.c.l.b16 %v1479
          %v1801 = vunpack.c.l.b16 %v1480
          %v1802 = vunpack.c.l.b16 %v1481
          %v1803 = vunpack.c.l.b16 %v1482
          %v1804 = vunpack.c.l.b16 %v1483
          %v1805 = vunpack.c.l.b16 %v1484
          %v1806 = vunpack.c.l.b16 %v1485
          %v1807 = vunpack.c.l.b16 %v1486
          %v1808 = vunpack.c.l.b16 %v1487
          %v1809 = vunpack.c.l.b16 %v1488
          %v1810 = vunpack.c.l.b16 %v1489
          %v1811 = vunpack.c.l.b16 %v1490
          %v1812 = vunpack.c.l.b16 %v1491
          %v1813 = vunpack.c.l.b16 %v1492
          %v1814 = vunpack.c.l.b16 %v1493
          %v1815 = vunpack.c.l.b16 %v1494
          %v1816 = vunpack.c.l.b16 %v1495
          %v1817 = vunpack.c.l.b16 %v1496
          %v1818 = vunpack.c.l.b16 %v1497
          %v1819 = vunpack.c.l.b16 %v1498
          %v1820 = vunpack.c.l.b16 %v1499
          %v1821 = vunpack.c.l.b16 %v1500
          %v1822 = vunpack.c.l.b16 %v1501
          %v1823 = vunpack.c.l.b16 %v1502
          %v1824 = vunpack.c.l.b16 %v1503
          %v1825 = vunpack.c.l.b16 %v1504
          %v1826 = vunpack.c.l.b16 %v1505
          %v1827 = vunpack.c.l.b16 %v1506
          %v1828 = vunpack.c.l.b16 %v1507
          %v1829 = vunpack.c.l.b16 %v1508
          %v1830 = vunpack.c.l.b16 %v1509
          %v1831 = vunpack.c.l.b16 %v1510
          %v1832 = vunpack.c.l.b16 %v1511
          %v1833 = vunpack.c.l.b16 %v1512
          %v1834 = vunpack.c.l.b16 %v1513
          %v1835 = vunpack.c.l.b16 %v1514
          %v1836 = vunpack.c.l.b16 %v1515
          %v1837 = vunpack.c.l.b16 %v1516
          %v1838 = vunpack.c.l.b16 %v1517
          %v1839 = vunpack.c.l.b16 %v1518
          %v1840 = vunpack.c.l.b16 %v1519
          %v1841 = vunpack.c.l.b16 %v1520
          %v1842 = vunpack.c.l.b16 %v1521
          %v1843 = vunpack.c.l.b16 %v1522
          %v1844 = vunpack.c.l.b16 %v1523
          %v1845 = vunpack.c.l.b16 %v1524
          %v1846 = vunpack.c.l.b16 %v1525
          %v1847 = vunpack.c.l.b16 %v1526
          %v1848 = vunpack.c.l.b16 %v1527
          %v1849 = vunpack.c.l.b16 %v1528
          %v1850 = vunpack.c.l.b16 %v1529
          %v1851 = vunpack.c.l.b16 %v1530
          %v1852 = vunpack.c.l.b16 %v1531
          %v1853 = vunpack.c.l.b16 %v1532
          %v1854 = vunpack.c.l.b16 %v1533
          %v1855 = vunpack.c.l.b16 %v1534
          %v1856 = vunpack.c.l.b16 %v1535
          %v1857 = vunpack.c.l.b16 %v1536
          %v1858 = vunpack.c.l.b16 %v1537
          %v1859 = vunpack.c.l.b16 %v1538
          %v1860 = vunpack.c.l.b16 %v1539
          %v1861 = vunpack.c.l.b16 %v1540
          %v1862 = vunpack.c.l.b16 %v1541
          %v1863 = vunpack.c.l.b16 %v1542
          %v1864 = vunpack.c.l.b16 %v1543
          %v1865 = vunpack.c.l.b16 %v1544
          %v1866 = vunpack.c.l.b16 %v1545
          %v1867 = vunpack.c.l.b16 %v1546
          %v1868 = vunpack.c.l.b16 %v1547
          %v1869 = vunpack.c.l.b16 %v1548
          %v1870 = vunpack.c.l.b16 %v1549
          %v1871 = vunpack.c.l.b16 %v1550
          %v1872 = vunpack.c.l.b16 %v1551
          %v1873 = vunpack.c.l.b16 %v1552
          %v1874 = vunpack.c.l.b16 %v1553
          %v1875 = vunpack.c.l.b16 %v1554
          %v1876 = vunpack.c.l.b16 %v1555
          %v1877 = vunpack.c.l.b16 %v1556
          %v1878 = vunpack.c.l.b16 %v1557
          %v1879 = vunpack.c.l.b16 %v1558
          %v1880 = vunpack.c.l.b16 %v1559
          %v1881 = vunpack.c.l.b16 %v1560
          %v1882 = vunpack.c.l.b16 %v1561
          %v1883 = vunpack.c.l.b16 %v1562
          %v1884 = vunpack.c.l.b16 %v1563
          %v1885 = vunpack.c.l.b16 %v1564
          %v1886 = vunpack.c.l.b16 %v1565
          %v1887 = vunpack.c.l.b16 %v1566
          %v1888 = vunpack.c.l.b16 %v1567
          %v1889 = vunpack.c.l.b16 %v1568
          %v1890 = vunpack.c.l.b16 %v1569
          %v1891 = vunpack.c.l.b16 %v1570
          %v1892 = vunpack.c.l.b16 %v1571
          %v1893 = vunpack.c.l.b16 %v1572
          %v1894 = vunpack.c.l.b16 %v1573
          %v1895 = vunpack.c.l.b16 %v1574
          %v1896 = vunpack.c.l.b16 %v1575
          %v1897 = vunpack.c.l.b16 %v1576
          %v1898 = vunpack.c.l.b16 %v1577
          %v1899 = vunpack.c.l.b16 %v1578
          %v1900 = vunpack.c.l.b16 %v1579
          %v1901 = vunpack.c.l.b16 %v1580
          %v1902 = vunpack.c.l.b16 %v1581
          %v1903 = vunpack.c.l.b16 %v1582
          %v1904 = vunpack.c.l.b16 %v1583
          %v1905 = vunpack.c.l.b16 %v1584
          %v1906 = vunpack.c.l.b16 %v1585
          %v1907 = vpack.c.b16 %v1748, %v1747
          %v1908 = vpack.c.b16 %v1750, %v1749
          %v1909 = vpack.c.b16 %v1752, %v1751
          %v1910 = vpack.c.b16 %v1754, %v1753
          %v1911 = vpack.c.b16 %v1756, %v1755
          %v1912 = vpack.c.b16 %v1758, %v1757
          %v1913 = vpack.c.b16 %v1760, %v1759
          %v1914 = vpack.c.b16 %v1762, %v1761
          %v1915 = vpack.c.b16 %v1764, %v1763
          %v1916 = vpack.c.b16 %v1766, %v1765
          %v1917 = vpack.c.b16 %v1768, %v1767
          %v1918 = vpack.c.b16 %v1770, %v1769
          %v1919 = vpack.c.b16 %v1772, %v1771
          %v1920 = vpack.c.b16 %v1774, %v1773
          %v1921 = vpack.c.b16 %v1776, %v1775
          %v1922 = vpack.c.b16 %v1778, %v1777
          %v1923 = vpack.c.b16 %v1780, %v1779
          %v1924 = vpack.c.b16 %v1782, %v1781
          %v1925 = vpack.c.b16 %v1784, %v1783
          %v1926 = vpack.c.b16 %v1786, %v1785
          %v1927 = vpack.c.b16 %v1788, %v1787
          %v1928 = vpack.c.b16 %v1790, %v1789
          %v1929 = vpack.c.b16 %v1792, %v1791
          %v1930 = vpack.c.b16 %v1794, %v1793
          %v1931 = vpack.c.b16 %v1796, %v1795
          %v1932 = vpack.c.b16 %v1798, %v1797
          %v1933 = vpack.c.b16 %v1800, %v1799
          %v1934 = vpack.c.b16 %v1802, %v1801
          %v1935 = vpack.c.b16 %v1804, %v1803
          %v1936 = vpack.c.b16 %v1806, %v1805
          %v1937 = vpack.c.b16 %v1808, %v1807
          %v1938 = vpack.c.b16 %v1810, %v1809
          %v1939 = vpack.c.b16 %v1812, %v1811
          %v1940 = vpack.c.b16 %v1814, %v1813
          %v1941 = vpack.c.b16 %v1816, %v1815
          %v1942 = vpack.c.b16 %v1818, %v1817
          %v1943 = vpack.c.b16 %v1820, %v1819
          %v1944 = vpack.c.b16 %v1822, %v1821
          %v1945 = vpack.c.b16 %v1824, %v1823
          %v1946 = vpack.c.b16 %v1826, %v1825
          %v1947 = vpack.c.b16 %v1828, %v1827
          %v1948 = vpack.c.b16 %v1830, %v1829
          %v1949 = vpack.c.b16 %v1832, %v1831
          %v1950 = vpack.c.b16 %v1834, %v1833
          %v1951 = vpack.c.b16 %v1836, %v1835
          %v1952 = vpack.c.b16 %v1838, %v1837
          %v1953 = vpack.c.b16 %v1840, %v1839
          %v1954 = vpack.c.b16 %v1842, %v1841
          %v1955 = vpack.c.b16 %v1844, %v1843
          %v1956 = vpack.c.b16 %v1846, %v1845
          %v1957 = vpack.c.b16 %v1848, %v1847
          %v1958 = vpack.c.b16 %v1850, %v1849
          %v1959 = vpack.c.b16 %v1852, %v1851
          %v1960 = vpack.c.b16 %v1854, %v1853
          %v1961 = vpack.c.b16 %v1856, %v1855
          %v1962 = vpack.c.b16 %v1858, %v1857
          %v1963 = vpack.c.b16 %v1860, %v1859
          %v1964 = vpack.c.b16 %v1862, %v1861
          %v1965 = vpack.c.b16 %v1864, %v1863
          %v1966 = vpack.c.b16 %v1866, %v1865
          %v1967 = vpack.c.b16 %v1868, %v1867
          %v1968 = vpack.c.b16 %v1870, %v1869
          %v1969 = vpack.c.b16 %v1872, %v1871
          %v1970 = vpack.c.b16 %v1874, %v1873
          %v1971 = vpack.c.b16 %v1876, %v1875
          %v1972 = vpack.c.b16 %v1878, %v1877
          %v1973 = vpack.c.b16 %v1880, %v1879
          %v1974 = vpack.c.b16 %v1882, %v1881
          %v1975 = vpack.c.b16 %v1884, %v1883
          %v1976 = vpack.c.b16 %v1886, %v1885
          %v1977 = vpack.c.b16 %v1888, %v1887
          %v1978 = vpack.c.b16 %v1890, %v1889
          %v1979 = vpack.c.b16 %v1892, %v1891
          %v1980 = vpack.c.b16 %v1894, %v1893
          %v1981 = vpack.c.b16 %v1896, %v1895
          %v1982 = vpack.c.b16 %v1898, %v1897
          %v1983 = vpack.c.b16 %v1900, %v1899
          %v1984 = vpack.c.b16 %v1902, %v1901
          %v1985 = vpack.c.b16 %v1904, %v1903
          %v1986 = vpack.c.b16 %v1906, %v1905
          %2067 = vmatprep.subr.bf16.mxu0 0
          %2068 = vmatpush1.bf16.msra.mxu0 %v1914
          %2069 = vmatprep.subr.bf16.mxu0 0
          %2070 = vmatpush1.bf16.msra.mxu0 %v1913
          %2071 = vmatprep.subr.bf16.mxu0 0
          %2072 = vmatpush1.bf16.msra.mxu0 %v1912
          %2073 = vmatprep.subr.bf16.mxu0 0
          %2074 = vmatpush1.bf16.msra.mxu0 %v1911
          %2075 = vmatprep.subr.bf16.mxu0 0
          %2076 = vmatpush1.bf16.msra.mxu0 %v1910
          %2077 = vmatprep.subr.bf16.mxu0 0
          %2078 = vmatpush1.bf16.msra.mxu0 %v1909
          %2079 = vmatprep.subr.bf16.mxu0 0
          %2080 = vmatpush1.bf16.msra.mxu0 %v1908
          %2081 = vmatprep.subr.bf16.mxu0 0
          %2082 = vmatpush1.bf16.msra.mxu0 %v1907
          %2083 = vmatprep.subr.bf16.mxu0 0
          %2084 = vmatpush2.bf16.msra.mxu0 %v1922
          %2085 = vmatprep.subr.bf16.mxu0 0
          %2086 = vmatpush2.bf16.msra.mxu0 %v1921
          %2087 = vmatprep.subr.bf16.mxu0 0
          %2088 = vmatpush2.bf16.msra.mxu0 %v1920
          %2089 = vmatprep.subr.bf16.mxu0 0
          %2090 = vmatpush2.bf16.msra.mxu0 %v1919
          %2091 = vmatprep.subr.bf16.mxu0 0
          %2092 = vmatpush2.bf16.msra.mxu0 %v1918
          %2093 = vmatprep.subr.bf16.mxu0 0
          %2094 = vmatpush2.bf16.msra.mxu0 %v1917
          %2095 = vmatprep.subr.bf16.mxu0 0
          %2096 = vmatpush2.bf16.msra.mxu0 %v1916
          %2097 = vmatprep.subr.bf16.mxu0 0
          %2098 = vmatpush2.bf16.msra.mxu0 %v1915
          %2099 = vmatprep.mubr.bf16.mxu0 %v1425
          %2100 = vmatmul.mubr.bf16.gmra.mxu0 %v1425
          %v2101 = vpop.f32.mrf.mxu0
          %v2102 = vadd.f32 %v1586, %v2101
          %v2103 = vpop.f32.mrf.mxu0
          %v2104 = vpop.f32.mrf.mxu0
          %v2105 = vpop.f32.mrf.mxu0
          %2106 = vdwg.mxu0
          %2107 = vmatprep.subr.bf16.mxu0 0
          %2108 = vmatpush1.bf16.msra.mxu0 %v1930
          %2109 = vmatprep.subr.bf16.mxu0 0
          %2110 = vmatpush1.bf16.msra.mxu0 %v1929
          %2111 = vmatprep.subr.bf16.mxu0 0
          %2112 = vmatpush1.bf16.msra.mxu0 %v1928
          %2113 = vmatprep.subr.bf16.mxu0 0
          %2114 = vmatpush1.bf16.msra.mxu0 %v1927
          %2115 = vmatprep.subr.bf16.mxu0 0
          %2116 = vmatpush1.bf16.msra.mxu0 %v1926
          %2117 = vmatprep.subr.bf16.mxu0 0
          %2118 = vmatpush1.bf16.msra.mxu0 %v1925
          %2119 = vmatprep.subr.bf16.mxu0 0
          %2120 = vmatpush1.bf16.msra.mxu0 %v1924
          %2121 = vmatprep.subr.bf16.mxu0 0
          %2122 = vmatpush1.bf16.msra.mxu0 %v1923
          %2123 = vmatprep.subr.bf16.mxu0 0
          %2124 = vmatpush2.bf16.msra.mxu0 %v1938
          %2125 = vmatprep.subr.bf16.mxu0 0
          %2126 = vmatpush2.bf16.msra.mxu0 %v1937
          %2127 = vmatprep.subr.bf16.mxu0 0
          %2128 = vmatpush2.bf16.msra.mxu0 %v1936
          %2129 = vmatprep.subr.bf16.mxu0 0
          %2130 = vmatpush2.bf16.msra.mxu0 %v1935
          %2131 = vmatprep.subr.bf16.mxu0 0
          %2132 = vmatpush2.bf16.msra.mxu0 %v1934
          %2133 = vmatprep.subr.bf16.mxu0 0
          %2134 = vmatpush2.bf16.msra.mxu0 %v1933
          %2135 = vmatprep.subr.bf16.mxu0 0
          %2136 = vmatpush2.bf16.msra.mxu0 %v1932
          %2137 = vmatprep.subr.bf16.mxu0 0
          %2138 = vmatpush2.bf16.msra.mxu0 %v1931
          %2139 = vmatprep.mubr.bf16.mxu0 %v1425
          %2140 = vmatmul.mubr.bf16.gmra.mxu0 %v1425
          %v2141 = vpop.f32.mrf.mxu0
          %v2142 = vadd.f32 %v2102, %v2141
          %v2143 = vpop.f32.mrf.mxu0
          %v2144 = vpop.f32.mrf.mxu0
          %v2145 = vpop.f32.mrf.mxu0
          %2146 = vdwg.mxu0
          %2147 = vmatprep.subr.bf16.mxu0 0
          %2148 = vmatpush1.bf16.msra.mxu0 %v1946
          %2149 = vmatprep.subr.bf16.mxu0 0
          %2150 = vmatpush1.bf16.msra.mxu0 %v1945
          %2151 = vmatprep.subr.bf16.mxu0 0
          %2152 = vmatpush1.bf16.msra.mxu0 %v1944
          %2153 = vmatprep.subr.bf16.mxu0 0
          %2154 = vmatpush1.bf16.msra.mxu0 %v1943
          %2155 = vmatprep.subr.bf16.mxu0 0
          %2156 = vmatpush1.bf16.msra.mxu0 %v1942
          %2157 = vmatprep.subr.bf16.mxu0 0
          %2158 = vmatpush1.bf16.msra.mxu0 %v1941
          %2159 = vmatprep.subr.bf16.mxu0 0
          %2160 = vmatpush1.bf16.msra.mxu0 %v1940
          %2161 = vmatprep.subr.bf16.mxu0 0
          %2162 = vmatpush1.bf16.msra.mxu0 %v1939
          %2163 = vmatprep.subr.bf16.mxu0 0
          %2164 = vmatpush2.bf16.msra.mxu0 %v1954
          %2165 = vmatprep.subr.bf16.mxu0 0
          %2166 = vmatpush2.bf16.msra.mxu0 %v1953
          %2167 = vmatprep.subr.bf16.mxu0 0
          %2168 = vmatpush2.bf16.msra.mxu0 %v1952
          %2169 = vmatprep.subr.bf16.mxu0 0
          %2170 = vmatpush2.bf16.msra.mxu0 %v1951
          %2171 = vmatprep.subr.bf16.mxu0 0
          %2172 = vmatpush2.bf16.msra.mxu0 %v1950
          %2173 = vmatprep.subr.bf16.mxu0 0
          %2174 = vmatpush2.bf16.msra.mxu0 %v1949
          %2175 = vmatprep.subr.bf16.mxu0 0
          %2176 = vmatpush2.bf16.msra.mxu0 %v1948
          %2177 = vmatprep.subr.bf16.mxu0 0
          %2178 = vmatpush2.bf16.msra.mxu0 %v1947
          %2179 = vmatprep.mubr.bf16.mxu0 %v1425
          %2180 = vmatmul.mubr.bf16.gmra.mxu0 %v1425
          %v2181 = vpop.f32.mrf.mxu0
          %v2182 = vadd.f32 %v2142, %v2181
          %v2183 = vpop.f32.mrf.mxu0
          %v2184 = vpop.f32.mrf.mxu0
          %v2185 = vpop.f32.mrf.mxu0
          %2186 = vdwg.mxu0
          %2187 = vmatprep.subr.bf16.mxu0 0
          %2188 = vmatpush1.bf16.msra.mxu0 %v1962
          %2189 = vmatprep.subr.bf16.mxu0 0
          %2190 = vmatpush1.bf16.msra.mxu0 %v1961
          %2191 = vmatprep.subr.bf16.mxu0 0
          %2192 = vmatpush1.bf16.msra.mxu0 %v1960
          %2193 = vmatprep.subr.bf16.mxu0 0
          %2194 = vmatpush1.bf16.msra.mxu0 %v1959
          %2195 = vmatprep.subr.bf16.mxu0 0
          %2196 = vmatpush1.bf16.msra.mxu0 %v1958
          %2197 = vmatprep.subr.bf16.mxu0 0
          %2198 = vmatpush1.bf16.msra.mxu0 %v1957
          %2199 = vmatprep.subr.bf16.mxu0 0
          %2200 = vmatpush1.bf16.msra.mxu0 %v1956
          %2201 = vmatprep.subr.bf16.mxu0 0
          %2202 = vmatpush1.bf16.msra.mxu0 %v1955
          %2203 = vmatprep.subr.bf16.mxu0 0
          %2204 = vmatpush2.bf16.msra.mxu0 %v1970
          %2205 = vmatprep.subr.bf16.mxu0 0
          %2206 = vmatpush2.bf16.msra.mxu0 %v1969
          %2207 = vmatprep.subr.bf16.mxu0 0
          %2208 = vmatpush2.bf16.msra.mxu0 %v1968
          %2209 = vmatprep.subr.bf16.mxu0 0
          %2210 = vmatpush2.bf16.msra.mxu0 %v1967
          %2211 = vmatprep.subr.bf16.mxu0 0
          %2212 = vmatpush2.bf16.msra.mxu0 %v1966
          %2213 = vmatprep.subr.bf16.mxu0 0
          %2214 = vmatpush2.bf16.msra.mxu0 %v1965
          %2215 = vmatprep.subr.bf16.mxu0 0
          %2216 = vmatpush2.bf16.msra.mxu0 %v1964
          %2217 = vmatprep.subr.bf16.mxu0 0
          %2218 = vmatpush2.bf16.msra.mxu0 %v1963
          %2219 = vmatprep.mubr.bf16.mxu0 %v1425
          %2220 = vmatmul.mubr.bf16.gmra.mxu0 %v1425
          %v2221 = vpop.f32.mrf.mxu0
          %v2222 = vadd.f32 %v2182, %v2221
          %v2223 = vpop.f32.mrf.mxu0
          %v2224 = vpop.f32.mrf.mxu0
          %v2225 = vpop.f32.mrf.mxu0
          %2226 = vdwg.mxu0
          %2227 = vmatprep.subr.bf16.mxu0 0
          %2228 = vmatpush1.bf16.msra.mxu0 %v1978
          %2229 = vmatprep.subr.bf16.mxu0 0
          %2230 = vmatpush1.bf16.msra.mxu0 %v1977
          %2231 = vmatprep.subr.bf16.mxu0 0
          %2232 = vmatpush1.bf16.msra.mxu0 %v1976
          %2233 = vmatprep.subr.bf16.mxu0 0
          %2234 = vmatpush1.bf16.msra.mxu0 %v1975
          %2235 = vmatprep.subr.bf16.mxu0 0
          %2236 = vmatpush1.bf16.msra.mxu0 %v1974
          %2237 = vmatprep.subr.bf16.mxu0 0
          %2238 = vmatpush1.bf16.msra.mxu0 %v1973
          %2239 = vmatprep.subr.bf16.mxu0 0
          %2240 = vmatpush1.bf16.msra.mxu0 %v1972
          %2241 = vmatprep.subr.bf16.mxu0 0
          %2242 = vmatpush1.bf16.msra.mxu0 %v1971
          %2243 = vmatprep.subr.bf16.mxu0 0
          %2244 = vmatpush2.bf16.msra.mxu0 %v1986
          %2245 = vmatprep.subr.bf16.mxu0 0
          %2246 = vmatpush2.bf16.msra.mxu0 %v1985
          %2247 = vmatprep.subr.bf16.mxu0 0
          %2248 = vmatpush2.bf16.msra.mxu0 %v1984
          %2249 = vmatprep.subr.bf16.mxu0 0
          %2250 = vmatpush2.bf16.msra.mxu0 %v1983
          %2251 = vmatprep.subr.bf16.mxu0 0
          %2252 = vmatpush2.bf16.msra.mxu0 %v1982
          %2253 = vmatprep.subr.bf16.mxu0 0
          %2254 = vmatpush2.bf16.msra.mxu0 %v1981
          %2255 = vmatprep.subr.bf16.mxu0 0
          %2256 = vmatpush2.bf16.msra.mxu0 %v1980
          %2257 = vmatprep.subr.bf16.mxu0 0
          %2258 = vmatpush2.bf16.msra.mxu0 %v1979
          %2259 = vmatprep.mubr.bf16.mxu0 %v1425
          %2260 = vmatmul.mubr.bf16.gmra.mxu0 %v1425
          %v2261 = vpop.f32.mrf.mxu0
          %v2262 = vadd.f32 %v2222, %v2261
          %v2263 = vpop.f32.mrf.mxu0
          %v2264 = vpop.f32.mrf.mxu0
          %v2265 = vpop.f32.mrf.mxu0
          %2266 = vdwg.mxu0
          %2267 = vst [vmem:[%s266] sm:$0x1] %v2262
        $region52: #{forward.1} parent=43 // pred_fallthru
          _
        %s2268 = sand.u32 %s173, 1
        %s2269 = scalar_lea.sflag [#allocation4], %s2268
        %s2270 = sand.u32 %s173, 1
        %s2271 = scalar_lea.vmem [#allocation3], %s2270
        // Predicated region
        $region53: #{forward.1} parent=43 // pred_check
          %p2272 = pneg %p183
        $region54: #{forward.1} parent=43 // pred_check_branch
          %2274 = sbr.rel (%p2272) target = $region56
        $region55: #{forward.1} parent=43 // pred_region
          %s2276 = ssub.s32 16, 16
          %2277 = vsyncadd %s2269, %s2276
          %s2278 = smul.addr %s24, 16
          %s2279 = scalar_lea.hbm %s6, %s2278
          %s2281 = sshll.u32 %s2271, 4
          %s2282 = int_to_ptr.vmem [resolvable:$true] %s2281
          %2284 = dma.vmem_to_hbm [thread:$0]  %s2282, 16, %s2279, %s2269
        $region56: #{forward.1} parent=43 // pred_fallthru
          _
      $region44: #{forward.1} parent=5 // pred_fallthru
        _
      %p2285 = scmp.le.s32.totalorder 2, %s15
      // Predicated region
      $region57: #{forward.1} parent=5 // pred_check
        %p2286 = pneg %p2285
      $region58: #{forward.1} parent=5 // pred_check_branch
        %2288 = sbr.rel (%p2286) target = $region60
      $region59: #{forward.1} parent=5 // pred_region
        %s2289 = ssub.s32 %s15, 2
        // Predicated region
        $region61: #{forward.1} parent=59 // pred_check
          %p2290 = pneg %p189
        $region62: #{forward.1} parent=59 // pred_check_branch
          %2292 = sbr.rel (%p2290) target = $region64
        $region63: #{forward.1} parent=59 // pred_region
          %s2293 = sand.u32 %s174, 1
          %s2294 = scalar_lea.sflag [#allocation4], %s2293
          %s2295 = sand.u32 %s174, 1
          %s2296 = scalar_lea.vmem [#allocation3], %s2295
          %2297 = dma.done %s2294, 16
        $region64: #{forward.1} parent=59 // pred_fallthru
          _
      $region60: #{forward.1} parent=5 // pred_fallthru
        _
    $region6: #{forward.1} parent=1 // loop_footer
      %s19 = sadd.s32 1, %s15
    $region7: #{forward.1} parent=1 // loop_footer_branch
      %14 = sbr.rel target = $region3
    $region8: #{forward.1} parent=1 // loop_exit
      _
    %2298 = vsyncpa [#allocation4], 1
    %s2299 = scalar_lea.sflag [#allocation4], 1
    %2300 = vsyncpa %s2299, 1

</llo_original>
